<compile_context>
chip_gen: v7x
topology: tpu7x:2x2x1
jax: 0.10.0
libtpu: 0.0.40
codegen_flags: <defaults>
</compile_context>

<pallas_src>
from functools import partial

import numpy as np
import jax
import jax.numpy as jnp
from jax.experimental import pallas as pl
from jax.experimental.pallas import tpu as pltpu

KSIZE = 7
PAD = KSIZE // 2


def _ncbam_kernel(x_ref, w1t_ref, w2t_ref, wconv_ref, cmask_ref, rmask_ref,
                  lbias_ref, a_ref, b_ref, o_ref, *, width, hw_valid, padded):
    Bt, C, HWp = x_ref.shape

    xf = x_ref[...].astype(jnp.float32)                      # (Bt, C, HWp)

    # ---------------- Channel attention (vectorized over the batch tile) ----
    avg_c = jnp.sum(xf, axis=2) * (1.0 / float(hw_valid))    # (Bt, C)
    if padded:
        # pad lanes get a -1e30 bias so they never win the max reduction
        max_c = jnp.max(xf + lbias_ref[...], axis=2)          # (Bt, C)
    else:
        max_c = jnp.max(xf, axis=2)                           # (Bt, C)

    # Shared MLP as two batched matmuls over the stacked (2*Bt, C) pools
    # instead of 2*Bt tiny (Cr,C)x(C,1) matvecs.
    pooled = jnp.concatenate([avg_c, max_c], axis=0)          # (2*Bt, C)
    h = jnp.maximum(
        jnp.dot(pooled, w1t_ref[...], preferred_element_type=jnp.float32), 0.0)
    mlp = jnp.dot(h, w2t_ref[...], preferred_element_type=jnp.float32)
    ca = jax.nn.sigmoid(mlp[:Bt] + mlp[Bt:])                  # (Bt, C)
    ca3 = ca[:, :, None]                                      # (Bt, C, 1)

    # ---------------- Spatial attention pooled maps --------------------------
    # x1 is not kept live across the conv section; only ca is, and x*ca is
    # recomputed in the final stage (1 extra vmul/elem, halves live state).
    x1 = xf * ca3                                             # (Bt, C, HWp)
    avg_s = jnp.mean(x1, axis=1)                              # (Bt, HWp)
    max_s = jnp.max(x1, axis=1)                               # (Bt, HWp)

    # ----- 7x7 'SAME' conv as lane rolls + boundary masks + 49-tap FMAs -----
    cmask = cmask_ref[...] > 0.5                              # (7, HWp) bool
    rmask = rmask_ref[...] > 0.5

    def lane_roll(v, delta):
        # r[:, p] = v[:, (p + delta) mod HWp]   (XLU lane rotation)
        s = (-delta) % HWp
        return v if s == 0 else pltpu.roll(v, s, axis=1)

    avg_cols, max_cols = [], []
    for i in range(KSIZE):
        dx = i - PAD
        ar = lane_roll(avg_s, dx)
        mr = lane_roll(max_s, dx)
        if i != PAD:                        # dx == 0 mask is all-ones -> skip
            cm = cmask[i:i + 1, :]
            ar = jnp.where(cm, ar, 0.0)     # where, not mul: safe for inf/NaN
            mr = jnp.where(cm, mr, 0.0)
        avg_cols.append(ar)
        max_cols.append(mr)

    taps = [wconv_ref[t] for t in range(2 * KSIZE * KSIZE)]   # hoisted SMEM reads
    acc = None
    for j in range(KSIZE):
        dy = j - PAD
        u = None
        for i in range(KSIZE):
            w_a = taps[j * KSIZE + i]                         # avg-channel tap
            w_m = taps[KSIZE * KSIZE + j * KSIZE + i]         # max-channel tap
            t = w_a * avg_cols[i] + w_m * max_cols[i]
            u = t if u is None else u + t
        r = lane_roll(u, dy * width)
        if j != PAD:                        # dy == 0 mask is all-ones -> skip
            r = jnp.where(rmask[j:j + 1, :], r, 0.0)
        acc = r if acc is None else acc + r
    sa = jax.nn.sigmoid(acc)                                  # (Bt, HWp)

    # ------------- NAM (eval-mode BN folded into a per-channel affine) ------
    # TODO(synk): BatchNorm is applied in eval mode (running stats); training-
    # mode batch statistics are not computed in-kernel.
    x2 = (xf * ca3) * sa[:, None, :]                          # (Bt, C, HWp)
    nam = jax.nn.sigmoid(x2 * a_ref[...] + b_ref[...])
    o_ref[...] = (x2 * nam).astype(o_ref.dtype)


def _lane_tables(H, W, HWp):
    """Boundary masks for the rolled 7x7 conv and the lane-pad max bias (tiny)."""
    HW = H * W
    p = np.arange(HW)
    col = p % W
    row = p // W
    cm = np.zeros((KSIZE, HWp), np.float32)
    rm = np.zeros((KSIZE, HWp), np.float32)
    for i in range(KSIZE):
        d = i - PAD
        cm[i, :HW] = ((col + d >= 0) & (col + d < W)).astype(np.float32)
        rm[i, :HW] = ((row + d >= 0) & (row + d < H)).astype(np.float32)
    lb = np.zeros((1, HWp), np.float32)
    lb[0, HW:] = -1e30                      # pad lanes lose every max comparison
    return cm, rm, lb


def ncbam_forward(x, w1, w2, wconv, a_vec, b_vec, *, block_b=None,
                  vmem_tile_budget=36 * 1024 * 1024):
    B, C, H, W = x.shape
    HW = H * W
    HWp = ((HW + 127) // 128) * 128         # lane-dense (multiple-of-128) tiles
    padded = HWp != HW
    Cr = w1.shape[0]
    io_dtype = x.dtype                      # bf16 in -> bf16 HBM I/O; f32 compute inside

    x3 = x.reshape(B, C, HW)                # no forced astype / batch-pad copy
    if padded:
        x3 = jnp.pad(x3, ((0, 0), (0, 0), (0, HWp - HW)))

    # Size the batch tile from a VMEM budget: double-buffered in+out I/O plus
    # ~3 live f32 intermediates per element.  Fits v7x's 64 MiB as well as
    # v5e/v6e's 128 MiB; keep >= 2 grid steps so v7x can use both TensorCores.
    per_b = C * HWp * (4 * x.dtype.itemsize + 12)
    bt = max(1, int(vmem_tile_budget // max(per_b, 1)))
    if block_b is not None:
        bt = int(block_b)
    bt = max(1, min(bt, B))
    if B >= 2:
        bt = min(bt, pl.cdiv(B, 2))
    grid_b = pl.cdiv(B, bt)                 # tail block handled by Pallas (no pad copy)

    f32 = jnp.float32
    w1t = jnp.asarray(w1, f32).T            # (C, Cr)  fc1 weight, transposed
    w2t = jnp.asarray(w2, f32).T            # (Cr, C)  fc2 weight, transposed
    wconv_flat = jnp.asarray(wconv, f32).reshape(-1)        # (2*7*7,) SMEM scalars

    cm_np, rm_np, lb_np = _lane_tables(H, W, HWp)
    cmask = jnp.asarray(cm_np)              # (7, HWp)
    rmask = jnp.asarray(rm_np)              # (7, HWp)
    lbias = jnp.asarray(lb_np)              # (1, HWp)
    a_in = jnp.asarray(a_vec, f32).reshape(C, 1)
    b_in = jnp.asarray(b_vec, f32).reshape(C, 1)

    kernel = partial(_ncbam_kernel, width=W, hw_valid=HW, padded=padded)

    out3 = pl.pallas_call(
        kernel,
        out_shape=jax.ShapeDtypeStruct((B, C, HWp), io_dtype),
        grid=(grid_b,),
        in_specs=[
            pl.BlockSpec((bt, C, HWp), lambda g: (g, 0, 0)),     # x batch tile
            pl.BlockSpec((C, Cr), lambda g: (0, 0)),             # fc1 weight^T
            pl.BlockSpec((Cr, C), lambda g: (0, 0)),             # fc2 weight^T
            pl.BlockSpec(memory_space=pltpu.MemorySpace.SMEM),   # 7x7 conv taps
            pl.BlockSpec((KSIZE, HWp), lambda g: (0, 0)),        # column masks
            pl.BlockSpec((KSIZE, HWp), lambda g: (0, 0)),        # row masks
            pl.BlockSpec((1, HWp), lambda g: (0, 0)),            # lane-pad max bias
            pl.BlockSpec((C, 1), lambda g: (0, 0)),              # NAM affine a
            pl.BlockSpec((C, 1), lambda g: (0, 0)),              # NAM affine b
        ],
        out_specs=pl.BlockSpec((bt, C, HWp), lambda g: (g, 0, 0)),
        compiler_params=pltpu.CompilerParams(
            dimension_semantics=("parallel",),
            vmem_limit_bytes=48 * 1024 * 1024),
    )(x3, w1t, w2t, wconv_flat, cmask, rmask, lbias, a_in, b_in)

    if padded:
        out3 = out3[:, :, :HW]
    return out3.reshape(B, C, H, W)


def ncbam_reference(x, w1, w2, wconv, a_vec, b_vec):
    """Pure-JAX reference matching the PyTorch forward (eval-mode BN)."""
    avg = jnp.mean(x, axis=(2, 3))                   # (B, C)
    mx = jnp.max(x, axis=(2, 3))                     # (B, C)

    def shared_mlp(p):
        h = jax.nn.relu(jnp.einsum("rc,bc->br", w1, p))
        return jnp.einsum("cr,br->bc", w2, h)

    ca = jax.nn.sigmoid(shared_mlp(avg) + shared_mlp(mx))
    x1 = x * ca[:, :, None, None]

    avg_s = jnp.mean(x1, axis=1, keepdims=True)
    max_s = jnp.max(x1, axis=1, keepdims=True)
    cat = jnp.concatenate([avg_s, max_s], axis=1)    # (B, 2, H, W)
    sa = jax.lax.conv_general_dilated(
        cat, wconv[None], window_strides=(1, 1), padding="SAME",
        dimension_numbers=("NCHW", "OIHW", "NCHW"))
    x2 = x1 * jax.nn.sigmoid(sa)

    nam = jax.nn.sigmoid(x2 * a_vec[None, :, :, None] + b_vec[None, :, :, None])
    return x2 * nam


if __name__ == "__main__":
    B, C, H, W = 2, 16, 16, 16
    ratio = 8
    Cr = C // ratio
    eps = 1e-5

    key = jax.random.PRNGKey(0)
    kx, k1, k2, k3, k4, k5 = jax.random.split(key, 6)
    x = jax.random.normal(kx, (B, C, H, W), jnp.float32)

    # deterministic synthetic parameters (shapes from the module __init__)
    w1 = 0.3 * jax.random.normal(k1, (Cr, C), jnp.float32)           # Conv2d(C, C//r, 1)
    w2 = 0.3 * jax.random.normal(k2, (C, Cr), jnp.float32)           # Conv2d(C//r, C, 1)
    wconv = 0.2 * jax.random.normal(k3, (2, KSIZE, KSIZE), jnp.float32)  # Conv2d(2, 1, 7)
    gamma = 1.0 + 0.5 * jax.random.normal(k4, (C,), jnp.float32)     # BN weight
    beta = 0.1 * jax.random.normal(k5, (C,), jnp.float32)            # BN bias
    running_mean = jnp.zeros((C,), jnp.float32)                      # BN running stats
    running_var = jnp.ones((C,), jnp.float32)

    # fold eval-mode BN + NAM weight_bn into one per-channel affine: y = x*a + b
    bn_scale = gamma / jnp.sqrt(running_var + eps)
    bn_bias = beta - running_mean * bn_scale
    wbn = jnp.abs(gamma) / jnp.sum(jnp.abs(gamma))
    a_vec = (bn_scale * wbn).reshape(C, 1)
    b_vec = (bn_bias * wbn).reshape(C, 1)

    # f32 I/O path: exact comparison against the pure-JAX reference.
    out = jax.block_until_ready(ncbam_forward(x, w1, w2, wconv, a_vec, b_vec))
    ref = ncbam_reference(x, w1, w2, wconv, a_vec, b_vec)
    np.testing.assert_allclose(np.asarray(out), np.asarray(ref), rtol=1e-3, atol=1e-4)

    # bf16 I/O path: halves HBM traffic; in-kernel compute stays f32.
    x_bf16 = x.astype(jnp.bfloat16)
    out_bf = jax.block_until_ready(
        ncbam_forward(x_bf16, w1, w2, wconv, a_vec, b_vec))
    ref_bf = ncbam_reference(x_bf16.astype(jnp.float32), w1, w2, wconv, a_vec, b_vec)
    np.testing.assert_allclose(np.asarray(out_bf.astype(jnp.float32)),
                               np.asarray(ref_bf), rtol=3e-2, atol=3e-2)
    print("KERNEL_OK")
</pallas_src>

<mosaic_0001>
module attributes {stable_mosaic.version = 11 : i64} {
  func.func @_ncbam_kernel(%arg0: i32, %arg1: memref<1x16x256xf32, #tpu.memory_space<vmem>>, %arg2: memref<16x2xf32, #tpu.memory_space<vmem>>, %arg3: memref<2x16xf32, #tpu.memory_space<vmem>>, %arg4: memref<98xf32, #tpu.memory_space<smem>>, %arg5: memref<7x256xf32, #tpu.memory_space<vmem>>, %arg6: memref<7x256xf32, #tpu.memory_space<vmem>>, %arg7: memref<1x256xf32, #tpu.memory_space<vmem>>, %arg8: memref<16x1xf32, #tpu.memory_space<vmem>>, %arg9: memref<16x1xf32, #tpu.memory_space<vmem>>, %arg10: memref<1x16x256xf32, #tpu.memory_space<vmem>>) attributes {dimension_semantics = [#tpu.dimension_semantics<parallel>], iteration_bounds = array<i64: 2>, scalar_prefetch = 0 : i64, scratch_operands = 0 : i64, tpu.core_type = #tpu.core_type<tc>, window_params = [{transform_indices = @transform_0, window_bounds = array<i64: 1, 16, 256>}, {pipeline_mode = #tpu.pipeline_mode<synchronous>, transform_indices = @transform_1, window_bounds = array<i64: 16, 2>}, {pipeline_mode = #tpu.pipeline_mode<synchronous>, transform_indices = @transform_2, window_bounds = array<i64: 2, 16>}, {transform_indices = @transform_3, window_bounds = array<i64: 98>}, {pipeline_mode = #tpu.pipeline_mode<synchronous>, transform_indices = @transform_4, window_bounds = array<i64: 7, 256>}, {pipeline_mode = #tpu.pipeline_mode<synchronous>, transform_indices = @transform_5, window_bounds = array<i64: 7, 256>}, {pipeline_mode = #tpu.pipeline_mode<synchronous>, transform_indices = @transform_6, window_bounds = array<i64: 1, 256>}, {pipeline_mode = #tpu.pipeline_mode<synchronous>, transform_indices = @transform_7, window_bounds = array<i64: 16, 1>}, {pipeline_mode = #tpu.pipeline_mode<synchronous>, transform_indices = @transform_8, window_bounds = array<i64: 16, 1>}, {transform_indices = @transform_9, window_bounds = array<i64: 1, 16, 256>}]} {
    %c0 = arith.constant 0 : index
    %c0_0 = arith.constant 0 : index
    %c0_1 = arith.constant 0 : index
    %0 = vector.load %arg1[%c0, %c0_0, %c0_1] : memref<1x16x256xf32, #tpu.memory_space<vmem>>, vector<1x16x256xf32>
    %cst = arith.constant dense<0.000000e+00> : vector<1x16xf32>
    %1 = vector.multi_reduction <add>, %0, %cst [2] : vector<1x16x256xf32> to vector<1x16xf32>
    %cst_2 = arith.constant 3.906250e-03 : f32
    %2 = vector.broadcast %cst_2 : f32 to vector<1x16xf32>
    %3 = arith.mulf %1, %2 : vector<1x16xf32>
    %cst_3 = arith.constant dense<0xFF800000> : vector<1x16xf32>
    %4 = vector.multi_reduction <maximumf>, %0, %cst_3 [2] : vector<1x16x256xf32> to vector<1x16xf32>
    %5 = tpu.concatenate %3, %4 in 0 : vector<1x16xf32>, vector<1x16xf32> -> vector<2x16xf32>
    %c0_4 = arith.constant 0 : index
    %c0_5 = arith.constant 0 : index
    %6 = vector.load %arg2[%c0_4, %c0_5] : memref<16x2xf32, #tpu.memory_space<vmem>>, vector<16x2xf32>
    %cst_6 = arith.constant dense<0.000000e+00> : vector<2x2xf32>
    %7 = tpu.matmul %5, %6, %cst_6 {dimension_numbers = #tpu.dot_dimension_numbers<[1], [0], [0], [1], [0, 0, 1, 1], [], []>} : vector<2x16xf32>, vector<16x2xf32>, vector<2x2xf32> -> vector<2x2xf32>
    %cst_7 = arith.constant 0.000000e+00 : f32
    %8 = vector.broadcast %cst_7 : f32 to vector<2x2xf32>
    %9 = arith.maximumf %7, %8 : vector<2x2xf32>
    %c0_8 = arith.constant 0 : index
    %c0_9 = arith.constant 0 : index
    %10 = vector.load %arg3[%c0_8, %c0_9] : memref<2x16xf32, #tpu.memory_space<vmem>>, vector<2x16xf32>
    %cst_10 = arith.constant dense<0.000000e+00> : vector<2x16xf32>
    %11 = tpu.matmul %9, %10, %cst_10 {dimension_numbers = #tpu.dot_dimension_numbers<[1], [0], [0], [1], [0, 0, 1, 1], [], []>} : vector<2x2xf32>, vector<2x16xf32>, vector<2x16xf32> -> vector<2x16xf32>
    %12 = vector.extract_strided_slice %11 {offsets = [0, 0], sizes = [1, 16], strides = [1, 1]} : vector<2x16xf32> to vector<1x16xf32>
    %13 = vector.extract_strided_slice %11 {offsets = [1, 0], sizes = [1, 16], strides = [1, 1]} : vector<2x16xf32> to vector<1x16xf32>
    %14 = arith.addf %12, %13 : vector<1x16xf32>
    %15 = arith.negf %14 : vector<1x16xf32>
    %16 = math.exp %15 : vector<1x16xf32>
    %cst_11 = arith.constant 1.000000e+00 : f32
    %17 = vector.broadcast %cst_11 : f32 to vector<1x16xf32>
    %18 = arith.addf %17, %16 : vector<1x16xf32>
    %19 = arith.divf %17, %18 : vector<1x16xf32>
    %20 = vector.shape_cast %19 : vector<1x16xf32> to vector<1x16x1xf32>
    %21 = vector.broadcast %20 : vector<1x16x1xf32> to vector<1x16x256xf32>
    %22 = arith.mulf %0, %21 : vector<1x16x256xf32>
    %cst_12 = arith.constant dense<0.000000e+00> : vector<1x256xf32>
    %23 = vector.multi_reduction <add>, %22, %cst_12 [1] : vector<1x16x256xf32> to vector<1x256xf32>
    %cst_13 = arith.constant 1.600000e+01 : f32
    %24 = vector.broadcast %cst_13 : f32 to vector<1x256xf32>
    %25 = arith.divf %23, %24 : vector<1x256xf32>
    %cst_14 = arith.constant dense<0xFF800000> : vector<1x256xf32>
    %26 = vector.multi_reduction <maximumf>, %22, %cst_14 [1] : vector<1x16x256xf32> to vector<1x256xf32>
    %c0_15 = arith.constant 0 : index
    %c0_16 = arith.constant 0 : index
    %27 = vector.load %arg5[%c0_15, %c0_16] : memref<7x256xf32, #tpu.memory_space<vmem>>, vector<7x256xf32>
    %cst_17 = arith.constant 5.000000e-01 : f32
    %28 = vector.broadcast %cst_17 : f32 to vector<7x256xf32>
    %29 = arith.cmpf ogt, %27, %28 : vector<7x256xf32>
    %c0_18 = arith.constant 0 : index
    %c0_19 = arith.constant 0 : index
    %30 = vector.load %arg6[%c0_18, %c0_19] : memref<7x256xf32, #tpu.memory_space<vmem>>, vector<7x256xf32>
    %cst_20 = arith.constant 5.000000e-01 : f32
    %31 = vector.broadcast %cst_20 : f32 to vector<7x256xf32>
    %32 = arith.cmpf ogt, %30, %31 : vector<7x256xf32>
    %c3_i32 = arith.constant 3 : i32
    %33 = tpu.dynamic_rotate %25 by %c3_i32 dim 1 : vector<1x256xf32>, i32 -> vector<1x256xf32>
    %c3_i32_21 = arith.constant 3 : i32
    %34 = tpu.dynamic_rotate %26 by %c3_i32_21 dim 1 : vector<1x256xf32>, i32 -> vector<1x256xf32>
    %35 = vector.extract_strided_slice %29 {offsets = [0, 0], sizes = [1, 256], strides = [1, 1]} : vector<7x256xi1> to vector<1x256xi1>
    %cst_22 = arith.constant 0.000000e+00 : f32
    %36 = vector.broadcast %cst_22 : f32 to vector<1x256xf32>
    %37 = arith.select %35, %33, %36 : vector<1x256xi1>, vector<1x256xf32>
    %cst_23 = arith.constant 0.000000e+00 : f32
    %38 = vector.broadcast %cst_23 : f32 to vector<1x256xf32>
    %39 = arith.select %35, %34, %38 : vector<1x256xi1>, vector<1x256xf32>
    %c2_i32 = arith.constant 2 : i32
    %40 = tpu.dynamic_rotate %25 by %c2_i32 dim 1 : vector<1x256xf32>, i32 -> vector<1x256xf32>
    %c2_i32_24 = arith.constant 2 : i32
    %41 = tpu.dynamic_rotate %26 by %c2_i32_24 dim 1 : vector<1x256xf32>, i32 -> vector<1x256xf32>
    %42 = vector.extract_strided_slice %29 {offsets = [1, 0], sizes = [1, 256], strides = [1, 1]} : vector<7x256xi1> to vector<1x256xi1>
    %cst_25 = arith.constant 0.000000e+00 : f32
    %43 = vector.broadcast %cst_25 : f32 to vector<1x256xf32>
    %44 = arith.select %42, %40, %43 : vector<1x256xi1>, vector<1x256xf32>
    %cst_26 = arith.constant 0.000000e+00 : f32
    %45 = vector.broadcast %cst_26 : f32 to vector<1x256xf32>
    %46 = arith.select %42, %41, %45 : vector<1x256xi1>, vector<1x256xf32>
    %c1_i32 = arith.constant 1 : i32
    %47 = tpu.dynamic_rotate %25 by %c1_i32 dim 1 : vector<1x256xf32>, i32 -> vector<1x256xf32>
    %c1_i32_27 = arith.constant 1 : i32
    %48 = tpu.dynamic_rotate %26 by %c1_i32_27 dim 1 : vector<1x256xf32>, i32 -> vector<1x256xf32>
    %49 = vector.extract_strided_slice %29 {offsets = [2, 0], sizes = [1, 256], strides = [1, 1]} : vector<7x256xi1> to vector<1x256xi1>
    %cst_28 = arith.constant 0.000000e+00 : f32
    %50 = vector.broadcast %cst_28 : f32 to vector<1x256xf32>
    %51 = arith.select %49, %47, %50 : vector<1x256xi1>, vector<1x256xf32>
    %cst_29 = arith.constant 0.000000e+00 : f32
    %52 = vector.broadcast %cst_29 : f32 to vector<1x256xf32>
    %53 = arith.select %49, %48, %52 : vector<1x256xi1>, vector<1x256xf32>
    %c255_i32 = arith.constant 255 : i32
    %54 = tpu.dynamic_rotate %25 by %c255_i32 dim 1 : vector<1x256xf32>, i32 -> vector<1x256xf32>
    %c255_i32_30 = arith.constant 255 : i32
    %55 = tpu.dynamic_rotate %26 by %c255_i32_30 dim 1 : vector<1x256xf32>, i32 -> vector<1x256xf32>
    %56 = vector.extract_strided_slice %29 {offsets = [4, 0], sizes = [1, 256], strides = [1, 1]} : vector<7x256xi1> to vector<1x256xi1>
    %cst_31 = arith.constant 0.000000e+00 : f32
    %57 = vector.broadcast %cst_31 : f32 to vector<1x256xf32>
    %58 = arith.select %56, %54, %57 : vector<1x256xi1>, vector<1x256xf32>
    %cst_32 = arith.constant 0.000000e+00 : f32
    %59 = vector.broadcast %cst_32 : f32 to vector<1x256xf32>
    %60 = arith.select %56, %55, %59 : vector<1x256xi1>, vector<1x256xf32>
    %c254_i32 = arith.constant 254 : i32
    %61 = tpu.dynamic_rotate %25 by %c254_i32 dim 1 : vector<1x256xf32>, i32 -> vector<1x256xf32>
    %c254_i32_33 = arith.constant 254 : i32
    %62 = tpu.dynamic_rotate %26 by %c254_i32_33 dim 1 : vector<1x256xf32>, i32 -> vector<1x256xf32>
    %63 = vector.extract_strided_slice %29 {offsets = [5, 0], sizes = [1, 256], strides = [1, 1]} : vector<7x256xi1> to vector<1x256xi1>
    %cst_34 = arith.constant 0.000000e+00 : f32
    %64 = vector.broadcast %cst_34 : f32 to vector<1x256xf32>
    %65 = arith.select %63, %61, %64 : vector<1x256xi1>, vector<1x256xf32>
    %cst_35 = arith.constant 0.000000e+00 : f32
    %66 = vector.broadcast %cst_35 : f32 to vector<1x256xf32>
    %67 = arith.select %63, %62, %66 : vector<1x256xi1>, vector<1x256xf32>
    %c253_i32 = arith.constant 253 : i32
    %68 = tpu.dynamic_rotate %25 by %c253_i32 dim 1 : vector<1x256xf32>, i32 -> vector<1x256xf32>
    %c253_i32_36 = arith.constant 253 : i32
    %69 = tpu.dynamic_rotate %26 by %c253_i32_36 dim 1 : vector<1x256xf32>, i32 -> vector<1x256xf32>
    %70 = vector.extract_strided_slice %29 {offsets = [6, 0], sizes = [1, 256], strides = [1, 1]} : vector<7x256xi1> to vector<1x256xi1>
    %cst_37 = arith.constant 0.000000e+00 : f32
    %71 = vector.broadcast %cst_37 : f32 to vector<1x256xf32>
    %72 = arith.select %70, %68, %71 : vector<1x256xi1>, vector<1x256xf32>
    %cst_38 = arith.constant 0.000000e+00 : f32
    %73 = vector.broadcast %cst_38 : f32 to vector<1x256xf32>
    %74 = arith.select %70, %69, %73 : vector<1x256xi1>, vector<1x256xf32>
    %c0_39 = arith.constant 0 : index
    %75 = memref.load %arg4[%c0_39] : memref<98xf32, #tpu.memory_space<smem>>
    %c1 = arith.constant 1 : index
    %76 = memref.load %arg4[%c1] : memref<98xf32, #tpu.memory_space<smem>>
    %c2 = arith.constant 2 : index
    %77 = memref.load %arg4[%c2] : memref<98xf32, #tpu.memory_space<smem>>
    %c3 = arith.constant 3 : index
    %78 = memref.load %arg4[%c3] : memref<98xf32, #tpu.memory_space<smem>>
    %c4 = arith.constant 4 : index
    %79 = memref.load %arg4[%c4] : memref<98xf32, #tpu.memory_space<smem>>
    %c5 = arith.constant 5 : index
    %80 = memref.load %arg4[%c5] : memref<98xf32, #tpu.memory_space<smem>>
    %c6 = arith.constant 6 : index
    %81 = memref.load %arg4[%c6] : memref<98xf32, #tpu.memory_space<smem>>
    %c7 = arith.constant 7 : index
    %82 = memref.load %arg4[%c7] : memref<98xf32, #tpu.memory_space<smem>>
    %c8 = arith.constant 8 : index
    %83 = memref.load %arg4[%c8] : memref<98xf32, #tpu.memory_space<smem>>
    %c9 = arith.constant 9 : index
    %84 = memref.load %arg4[%c9] : memref<98xf32, #tpu.memory_space<smem>>
    %c10 = arith.constant 10 : index
    %85 = memref.load %arg4[%c10] : memref<98xf32, #tpu.memory_space<smem>>
    %c11 = arith.constant 11 : index
    %86 = memref.load %arg4[%c11] : memref<98xf32, #tpu.memory_space<smem>>
    %c12 = arith.constant 12 : index
    %87 = memref.load %arg4[%c12] : memref<98xf32, #tpu.memory_space<smem>>
    %c13 = arith.constant 13 : index
    %88 = memref.load %arg4[%c13] : memref<98xf32, #tpu.memory_space<smem>>
    %c14 = arith.constant 14 : index
    %89 = memref.load %arg4[%c14] : memref<98xf32, #tpu.memory_space<smem>>
    %c15 = arith.constant 15 : index
    %90 = memref.load %arg4[%c15] : memref<98xf32, #tpu.memory_space<smem>>
    %c16 = arith.constant 16 : index
    %91 = memref.load %arg4[%c16] : memref<98xf32, #tpu.memory_space<smem>>
    %c17 = arith.constant 17 : index
    %92 = memref.load %arg4[%c17] : memref<98xf32, #tpu.memory_space<smem>>
    %c18 = arith.constant 18 : index
    %93 = memref.load %arg4[%c18] : memref<98xf32, #tpu.memory_space<smem>>
    %c19 = arith.constant 19 : index
    %94 = memref.load %arg4[%c19] : memref<98xf32, #tpu.memory_space<smem>>
    %c20 = arith.constant 20 : index
    %95 = memref.load %arg4[%c20] : memref<98xf32, #tpu.memory_space<smem>>
    %c21 = arith.constant 21 : index
    %96 = memref.load %arg4[%c21] : memref<98xf32, #tpu.memory_space<smem>>
    %c22 = arith.constant 22 : index
    %97 = memref.load %arg4[%c22] : memref<98xf32, #tpu.memory_space<smem>>
    %c23 = arith.constant 23 : index
    %98 = memref.load %arg4[%c23] : memref<98xf32, #tpu.memory_space<smem>>
    %c24 = arith.constant 24 : index
    %99 = memref.load %arg4[%c24] : memref<98xf32, #tpu.memory_space<smem>>
    %c25 = arith.constant 25 : index
    %100 = memref.load %arg4[%c25] : memref<98xf32, #tpu.memory_space<smem>>
    %c26 = arith.constant 26 : index
    %101 = memref.load %arg4[%c26] : memref<98xf32, #tpu.memory_space<smem>>
    %c27 = arith.constant 27 : index
    %102 = memref.load %arg4[%c27] : memref<98xf32, #tpu.memory_space<smem>>
    %c28 = arith.constant 28 : index
    %103 = memref.load %arg4[%c28] : memref<98xf32, #tpu.memory_space<smem>>
    %c29 = arith.constant 29 : index
    %104 = memref.load %arg4[%c29] : memref<98xf32, #tpu.memory_space<smem>>
    %c30 = arith.constant 30 : index
    %105 = memref.load %arg4[%c30] : memref<98xf32, #tpu.memory_space<smem>>
    %c31 = arith.constant 31 : index
    %106 = memref.load %arg4[%c31] : memref<98xf32, #tpu.memory_space<smem>>
    %c32 = arith.constant 32 : index
    %107 = memref.load %arg4[%c32] : memref<98xf32, #tpu.memory_space<smem>>
    %c33 = arith.constant 33 : index
    %108 = memref.load %arg4[%c33] : memref<98xf32, #tpu.memory_space<smem>>
    %c34 = arith.constant 34 : index
    %109 = memref.load %arg4[%c34] : memref<98xf32, #tpu.memory_space<smem>>
    %c35 = arith.constant 35 : index
    %110 = memref.load %arg4[%c35] : memref<98xf32, #tpu.memory_space<smem>>
    %c36 = arith.constant 36 : index
    %111 = memref.load %arg4[%c36] : memref<98xf32, #tpu.memory_space<smem>>
    %c37 = arith.constant 37 : index
    %112 = memref.load %arg4[%c37] : memref<98xf32, #tpu.memory_space<smem>>
    %c38 = arith.constant 38 : index
    %113 = memref.load %arg4[%c38] : memref<98xf32, #tpu.memory_space<smem>>
    %c39 = arith.constant 39 : index
    %114 = memref.load %arg4[%c39] : memref<98xf32, #tpu.memory_space<smem>>
    %c40 = arith.constant 40 : index
    %115 = memref.load %arg4[%c40] : memref<98xf32, #tpu.memory_space<smem>>
    %c41 = arith.constant 41 : index
    %116 = memref.load %arg4[%c41] : memref<98xf32, #tpu.memory_space<smem>>
    %c42 = arith.constant 42 : index
    %117 = memref.load %arg4[%c42] : memref<98xf32, #tpu.memory_space<smem>>
    %c43 = arith.constant 43 : index
    %118 = memref.load %arg4[%c43] : memref<98xf32, #tpu.memory_space<smem>>
    %c44 = arith.constant 44 : index
    %119 = memref.load %arg4[%c44] : memref<98xf32, #tpu.memory_space<smem>>
    %c45 = arith.constant 45 : index
    %120 = memref.load %arg4[%c45] : memref<98xf32, #tpu.memory_space<smem>>
    %c46 = arith.constant 46 : index
    %121 = memref.load %arg4[%c46] : memref<98xf32, #tpu.memory_space<smem>>
    %c47 = arith.constant 47 : index
    %122 = memref.load %arg4[%c47] : memref<98xf32, #tpu.memory_space<smem>>
    %c48 = arith.constant 48 : index
    %123 = memref.load %arg4[%c48] : memref<98xf32, #tpu.memory_space<smem>>
    %c49 = arith.constant 49 : index
    %124 = memref.load %arg4[%c49] : memref<98xf32, #tpu.memory_space<smem>>
    %c50 = arith.constant 50 : index
    %125 = memref.load %arg4[%c50] : memref<98xf32, #tpu.memory_space<smem>>
    %c51 = arith.constant 51 : index
    %126 = memref.load %arg4[%c51] : memref<98xf32, #tpu.memory_space<smem>>
    %c52 = arith.constant 52 : index
    %127 = memref.load %arg4[%c52] : memref<98xf32, #tpu.memory_space<smem>>
    %c53 = arith.constant 53 : index
    %128 = memref.load %arg4[%c53] : memref<98xf32, #tpu.memory_space<smem>>
    %c54 = arith.constant 54 : index
    %129 = memref.load %arg4[%c54] : memref<98xf32, #tpu.memory_space<smem>>
    %c55 = arith.constant 55 : index
    %130 = memref.load %arg4[%c55] : memref<98xf32, #tpu.memory_space<smem>>
    %c56 = arith.constant 56 : index
    %131 = memref.load %arg4[%c56] : memref<98xf32, #tpu.memory_space<smem>>
    %c57 = arith.constant 57 : index
    %132 = memref.load %arg4[%c57] : memref<98xf32, #tpu.memory_space<smem>>
    %c58 = arith.constant 58 : index
    %133 = memref.load %arg4[%c58] : memref<98xf32, #tpu.memory_space<smem>>
    %c59 = arith.constant 59 : index
    %134 = memref.load %arg4[%c59] : memref<98xf32, #tpu.memory_space<smem>>
    %c60 = arith.constant 60 : index
    %135 = memref.load %arg4[%c60] : memref<98xf32, #tpu.memory_space<smem>>
    %c61 = arith.constant 61 : index
    %136 = memref.load %arg4[%c61] : memref<98xf32, #tpu.memory_space<smem>>
    %c62 = arith.constant 62 : index
    %137 = memref.load %arg4[%c62] : memref<98xf32, #tpu.memory_space<smem>>
    %c63 = arith.constant 63 : index
    %138 = memref.load %arg4[%c63] : memref<98xf32, #tpu.memory_space<smem>>
    %c64 = arith.constant 64 : index
    %139 = memref.load %arg4[%c64] : memref<98xf32, #tpu.memory_space<smem>>
    %c65 = arith.constant 65 : index
    %140 = memref.load %arg4[%c65] : memref<98xf32, #tpu.memory_space<smem>>
    %c66 = arith.constant 66 : index
    %141 = memref.load %arg4[%c66] : memref<98xf32, #tpu.memory_space<smem>>
    %c67 = arith.constant 67 : index
    %142 = memref.load %arg4[%c67] : memref<98xf32, #tpu.memory_space<smem>>
    %c68 = arith.constant 68 : index
    %143 = memref.load %arg4[%c68] : memref<98xf32, #tpu.memory_space<smem>>
    %c69 = arith.constant 69 : index
    %144 = memref.load %arg4[%c69] : memref<98xf32, #tpu.memory_space<smem>>
    %c70 = arith.constant 70 : index
    %145 = memref.load %arg4[%c70] : memref<98xf32, #tpu.memory_space<smem>>
    %c71 = arith.constant 71 : index
    %146 = memref.load %arg4[%c71] : memref<98xf32, #tpu.memory_space<smem>>
    %c72 = arith.constant 72 : index
    %147 = memref.load %arg4[%c72] : memref<98xf32, #tpu.memory_space<smem>>
    %c73 = arith.constant 73 : index
    %148 = memref.load %arg4[%c73] : memref<98xf32, #tpu.memory_space<smem>>
    %c74 = arith.constant 74 : index
    %149 = memref.load %arg4[%c74] : memref<98xf32, #tpu.memory_space<smem>>
    %c75 = arith.constant 75 : index
    %150 = memref.load %arg4[%c75] : memref<98xf32, #tpu.memory_space<smem>>
    %c76 = arith.constant 76 : index
    %151 = memref.load %arg4[%c76] : memref<98xf32, #tpu.memory_space<smem>>
    %c77 = arith.constant 77 : index
    %152 = memref.load %arg4[%c77] : memref<98xf32, #tpu.memory_space<smem>>
    %c78 = arith.constant 78 : index
    %153 = memref.load %arg4[%c78] : memref<98xf32, #tpu.memory_space<smem>>
    %c79 = arith.constant 79 : index
    %154 = memref.load %arg4[%c79] : memref<98xf32, #tpu.memory_space<smem>>
    %c80 = arith.constant 80 : index
    %155 = memref.load %arg4[%c80] : memref<98xf32, #tpu.memory_space<smem>>
    %c81 = arith.constant 81 : index
    %156 = memref.load %arg4[%c81] : memref<98xf32, #tpu.memory_space<smem>>
    %c82 = arith.constant 82 : index
    %157 = memref.load %arg4[%c82] : memref<98xf32, #tpu.memory_space<smem>>
    %c83 = arith.constant 83 : index
    %158 = memref.load %arg4[%c83] : memref<98xf32, #tpu.memory_space<smem>>
    %c84 = arith.constant 84 : index
    %159 = memref.load %arg4[%c84] : memref<98xf32, #tpu.memory_space<smem>>
    %c85 = arith.constant 85 : index
    %160 = memref.load %arg4[%c85] : memref<98xf32, #tpu.memory_space<smem>>
    %c86 = arith.constant 86 : index
    %161 = memref.load %arg4[%c86] : memref<98xf32, #tpu.memory_space<smem>>
    %c87 = arith.constant 87 : index
    %162 = memref.load %arg4[%c87] : memref<98xf32, #tpu.memory_space<smem>>
    %c88 = arith.constant 88 : index
    %163 = memref.load %arg4[%c88] : memref<98xf32, #tpu.memory_space<smem>>
    %c89 = arith.constant 89 : index
    %164 = memref.load %arg4[%c89] : memref<98xf32, #tpu.memory_space<smem>>
    %c90 = arith.constant 90 : index
    %165 = memref.load %arg4[%c90] : memref<98xf32, #tpu.memory_space<smem>>
    %c91 = arith.constant 91 : index
    %166 = memref.load %arg4[%c91] : memref<98xf32, #tpu.memory_space<smem>>
    %c92 = arith.constant 92 : index
    %167 = memref.load %arg4[%c92] : memref<98xf32, #tpu.memory_space<smem>>
    %c93 = arith.constant 93 : index
    %168 = memref.load %arg4[%c93] : memref<98xf32, #tpu.memory_space<smem>>
    %c94 = arith.constant 94 : index
    %169 = memref.load %arg4[%c94] : memref<98xf32, #tpu.memory_space<smem>>
    %c95 = arith.constant 95 : index
    %170 = memref.load %arg4[%c95] : memref<98xf32, #tpu.memory_space<smem>>
    %c96 = arith.constant 96 : index
    %171 = memref.load %arg4[%c96] : memref<98xf32, #tpu.memory_space<smem>>
    %c97 = arith.constant 97 : index
    %172 = memref.load %arg4[%c97] : memref<98xf32, #tpu.memory_space<smem>>
    %173 = vector.broadcast %75 : f32 to vector<1x256xf32>
    %174 = arith.mulf %173, %37 : vector<1x256xf32>
    %175 = vector.broadcast %124 : f32 to vector<1x256xf32>
    %176 = arith.mulf %175, %39 : vector<1x256xf32>
    %177 = arith.addf %174, %176 : vector<1x256xf32>
    %178 = vector.broadcast %76 : f32 to vector<1x256xf32>
    %179 = arith.mulf %178, %44 : vector<1x256xf32>
    %180 = vector.broadcast %125 : f32 to vector<1x256xf32>
    %181 = arith.mulf %180, %46 : vector<1x256xf32>
    %182 = arith.addf %179, %181 : vector<1x256xf32>
    %183 = arith.addf %177, %182 : vector<1x256xf32>
    %184 = vector.broadcast %77 : f32 to vector<1x256xf32>
    %185 = arith.mulf %184, %51 : vector<1x256xf32>
    %186 = vector.broadcast %126 : f32 to vector<1x256xf32>
    %187 = arith.mulf %186, %53 : vector<1x256xf32>
    %188 = arith.addf %185, %187 : vector<1x256xf32>
    %189 = arith.addf %183, %188 : vector<1x256xf32>
    %190 = vector.broadcast %78 : f32 to vector<1x256xf32>
    %191 = arith.mulf %190, %25 : vector<1x256xf32>
    %192 = vector.broadcast %127 : f32 to vector<1x256xf32>
    %193 = arith.mulf %192, %26 : vector<1x256xf32>
    %194 = arith.addf %191, %193 : vector<1x256xf32>
    %195 = arith.addf %189, %194 : vector<1x256xf32>
    %196 = vector.broadcast %79 : f32 to vector<1x256xf32>
    %197 = arith.mulf %196, %58 : vector<1x256xf32>
    %198 = vector.broadcast %128 : f32 to vector<1x256xf32>
    %199 = arith.mulf %198, %60 : vector<1x256xf32>
    %200 = arith.addf %197, %199 : vector<1x256xf32>
    %201 = arith.addf %195, %200 : vector<1x256xf32>
    %202 = vector.broadcast %80 : f32 to vector<1x256xf32>
    %203 = arith.mulf %202, %65 : vector<1x256xf32>
    %204 = vector.broadcast %129 : f32 to vector<1x256xf32>
    %205 = arith.mulf %204, %67 : vector<1x256xf32>
    %206 = arith.addf %203, %205 : vector<1x256xf32>
    %207 = arith.addf %201, %206 : vector<1x256xf32>
    %208 = vector.broadcast %81 : f32 to vector<1x256xf32>
    %209 = arith.mulf %208, %72 : vector<1x256xf32>
    %210 = vector.broadcast %130 : f32 to vector<1x256xf32>
    %211 = arith.mulf %210, %74 : vector<1x256xf32>
    %212 = arith.addf %209, %211 : vector<1x256xf32>
    %213 = arith.addf %207, %212 : vector<1x256xf32>
    %c48_i32 = arith.constant 48 : i32
    %214 = tpu.dynamic_rotate %213 by %c48_i32 dim 1 : vector<1x256xf32>, i32 -> vector<1x256xf32>
    %215 = vector.extract_strided_slice %32 {offsets = [0, 0], sizes = [1, 256], strides = [1, 1]} : vector<7x256xi1> to vector<1x256xi1>
    %cst_40 = arith.constant 0.000000e+00 : f32
    %216 = vector.broadcast %cst_40 : f32 to vector<1x256xf32>
    %217 = arith.select %215, %214, %216 : vector<1x256xi1>, vector<1x256xf32>
    %218 = vector.broadcast %82 : f32 to vector<1x256xf32>
    %219 = arith.mulf %218, %37 : vector<1x256xf32>
    %220 = vector.broadcast %131 : f32 to vector<1x256xf32>
    %221 = arith.mulf %220, %39 : vector<1x256xf32>
    %222 = arith.addf %219, %221 : vector<1x256xf32>
    %223 = vector.broadcast %83 : f32 to vector<1x256xf32>
    %224 = arith.mulf %223, %44 : vector<1x256xf32>
    %225 = vector.broadcast %132 : f32 to vector<1x256xf32>
    %226 = arith.mulf %225, %46 : vector<1x256xf32>
    %227 = arith.addf %224, %226 : vector<1x256xf32>
    %228 = arith.addf %222, %227 : vector<1x256xf32>
    %229 = vector.broadcast %84 : f32 to vector<1x256xf32>
    %230 = arith.mulf %229, %51 : vector<1x256xf32>
    %231 = vector.broadcast %133 : f32 to vector<1x256xf32>
    %232 = arith.mulf %231, %53 : vector<1x256xf32>
    %233 = arith.addf %230, %232 : vector<1x256xf32>
    %234 = arith.addf %228, %233 : vector<1x256xf32>
    %235 = vector.broadcast %85 : f32 to vector<1x256xf32>
    %236 = arith.mulf %235, %25 : vector<1x256xf32>
    %237 = vector.broadcast %134 : f32 to vector<1x256xf32>
    %238 = arith.mulf %237, %26 : vector<1x256xf32>
    %239 = arith.addf %236, %238 : vector<1x256xf32>
    %240 = arith.addf %234, %239 : vector<1x256xf32>
    %241 = vector.broadcast %86 : f32 to vector<1x256xf32>
    %242 = arith.mulf %241, %58 : vector<1x256xf32>
    %243 = vector.broadcast %135 : f32 to vector<1x256xf32>
    %244 = arith.mulf %243, %60 : vector<1x256xf32>
    %245 = arith.addf %242, %244 : vector<1x256xf32>
    %246 = arith.addf %240, %245 : vector<1x256xf32>
    %247 = vector.broadcast %87 : f32 to vector<1x256xf32>
    %248 = arith.mulf %247, %65 : vector<1x256xf32>
    %249 = vector.broadcast %136 : f32 to vector<1x256xf32>
    %250 = arith.mulf %249, %67 : vector<1x256xf32>
    %251 = arith.addf %248, %250 : vector<1x256xf32>
    %252 = arith.addf %246, %251 : vector<1x256xf32>
    %253 = vector.broadcast %88 : f32 to vector<1x256xf32>
    %254 = arith.mulf %253, %72 : vector<1x256xf32>
    %255 = vector.broadcast %137 : f32 to vector<1x256xf32>
    %256 = arith.mulf %255, %74 : vector<1x256xf32>
    %257 = arith.addf %254, %256 : vector<1x256xf32>
    %258 = arith.addf %252, %257 : vector<1x256xf32>
    %c32_i32 = arith.constant 32 : i32
    %259 = tpu.dynamic_rotate %258 by %c32_i32 dim 1 : vector<1x256xf32>, i32 -> vector<1x256xf32>
    %260 = vector.extract_strided_slice %32 {offsets = [1, 0], sizes = [1, 256], strides = [1, 1]} : vector<7x256xi1> to vector<1x256xi1>
    %cst_41 = arith.constant 0.000000e+00 : f32
    %261 = vector.broadcast %cst_41 : f32 to vector<1x256xf32>
    %262 = arith.select %260, %259, %261 : vector<1x256xi1>, vector<1x256xf32>
    %263 = arith.addf %217, %262 : vector<1x256xf32>
    %264 = vector.broadcast %89 : f32 to vector<1x256xf32>
    %265 = arith.mulf %264, %37 : vector<1x256xf32>
    %266 = vector.broadcast %138 : f32 to vector<1x256xf32>
    %267 = arith.mulf %266, %39 : vector<1x256xf32>
    %268 = arith.addf %265, %267 : vector<1x256xf32>
    %269 = vector.broadcast %90 : f32 to vector<1x256xf32>
    %270 = arith.mulf %269, %44 : vector<1x256xf32>
    %271 = vector.broadcast %139 : f32 to vector<1x256xf32>
    %272 = arith.mulf %271, %46 : vector<1x256xf32>
    %273 = arith.addf %270, %272 : vector<1x256xf32>
    %274 = arith.addf %268, %273 : vector<1x256xf32>
    %275 = vector.broadcast %91 : f32 to vector<1x256xf32>
    %276 = arith.mulf %275, %51 : vector<1x256xf32>
    %277 = vector.broadcast %140 : f32 to vector<1x256xf32>
    %278 = arith.mulf %277, %53 : vector<1x256xf32>
    %279 = arith.addf %276, %278 : vector<1x256xf32>
    %280 = arith.addf %274, %279 : vector<1x256xf32>
    %281 = vector.broadcast %92 : f32 to vector<1x256xf32>
    %282 = arith.mulf %281, %25 : vector<1x256xf32>
    %283 = vector.broadcast %141 : f32 to vector<1x256xf32>
    %284 = arith.mulf %283, %26 : vector<1x256xf32>
    %285 = arith.addf %282, %284 : vector<1x256xf32>
    %286 = arith.addf %280, %285 : vector<1x256xf32>
    %287 = vector.broadcast %93 : f32 to vector<1x256xf32>
    %288 = arith.mulf %287, %58 : vector<1x256xf32>
    %289 = vector.broadcast %142 : f32 to vector<1x256xf32>
    %290 = arith.mulf %289, %60 : vector<1x256xf32>
    %291 = arith.addf %288, %290 : vector<1x256xf32>
    %292 = arith.addf %286, %291 : vector<1x256xf32>
    %293 = vector.broadcast %94 : f32 to vector<1x256xf32>
    %294 = arith.mulf %293, %65 : vector<1x256xf32>
    %295 = vector.broadcast %143 : f32 to vector<1x256xf32>
    %296 = arith.mulf %295, %67 : vector<1x256xf32>
    %297 = arith.addf %294, %296 : vector<1x256xf32>
    %298 = arith.addf %292, %297 : vector<1x256xf32>
    %299 = vector.broadcast %95 : f32 to vector<1x256xf32>
    %300 = arith.mulf %299, %72 : vector<1x256xf32>
    %301 = vector.broadcast %144 : f32 to vector<1x256xf32>
    %302 = arith.mulf %301, %74 : vector<1x256xf32>
    %303 = arith.addf %300, %302 : vector<1x256xf32>
    %304 = arith.addf %298, %303 : vector<1x256xf32>
    %c16_i32 = arith.constant 16 : i32
    %305 = tpu.dynamic_rotate %304 by %c16_i32 dim 1 : vector<1x256xf32>, i32 -> vector<1x256xf32>
    %306 = vector.extract_strided_slice %32 {offsets = [2, 0], sizes = [1, 256], strides = [1, 1]} : vector<7x256xi1> to vector<1x256xi1>
    %cst_42 = arith.constant 0.000000e+00 : f32
    %307 = vector.broadcast %cst_42 : f32 to vector<1x256xf32>
    %308 = arith.select %306, %305, %307 : vector<1x256xi1>, vector<1x256xf32>
    %309 = arith.addf %263, %308 : vector<1x256xf32>
    %310 = vector.broadcast %96 : f32 to vector<1x256xf32>
    %311 = arith.mulf %310, %37 : vector<1x256xf32>
    %312 = vector.broadcast %145 : f32 to vector<1x256xf32>
    %313 = arith.mulf %312, %39 : vector<1x256xf32>
    %314 = arith.addf %311, %313 : vector<1x256xf32>
    %315 = vector.broadcast %97 : f32 to vector<1x256xf32>
    %316 = arith.mulf %315, %44 : vector<1x256xf32>
    %317 = vector.broadcast %146 : f32 to vector<1x256xf32>
    %318 = arith.mulf %317, %46 : vector<1x256xf32>
    %319 = arith.addf %316, %318 : vector<1x256xf32>
    %320 = arith.addf %314, %319 : vector<1x256xf32>
    %321 = vector.broadcast %98 : f32 to vector<1x256xf32>
    %322 = arith.mulf %321, %51 : vector<1x256xf32>
    %323 = vector.broadcast %147 : f32 to vector<1x256xf32>
    %324 = arith.mulf %323, %53 : vector<1x256xf32>
    %325 = arith.addf %322, %324 : vector<1x256xf32>
    %326 = arith.addf %320, %325 : vector<1x256xf32>
    %327 = vector.broadcast %99 : f32 to vector<1x256xf32>
    %328 = arith.mulf %327, %25 : vector<1x256xf32>
    %329 = vector.broadcast %148 : f32 to vector<1x256xf32>
    %330 = arith.mulf %329, %26 : vector<1x256xf32>
    %331 = arith.addf %328, %330 : vector<1x256xf32>
    %332 = arith.addf %326, %331 : vector<1x256xf32>
    %333 = vector.broadcast %100 : f32 to vector<1x256xf32>
    %334 = arith.mulf %333, %58 : vector<1x256xf32>
    %335 = vector.broadcast %149 : f32 to vector<1x256xf32>
    %336 = arith.mulf %335, %60 : vector<1x256xf32>
    %337 = arith.addf %334, %336 : vector<1x256xf32>
    %338 = arith.addf %332, %337 : vector<1x256xf32>
    %339 = vector.broadcast %101 : f32 to vector<1x256xf32>
    %340 = arith.mulf %339, %65 : vector<1x256xf32>
    %341 = vector.broadcast %150 : f32 to vector<1x256xf32>
    %342 = arith.mulf %341, %67 : vector<1x256xf32>
    %343 = arith.addf %340, %342 : vector<1x256xf32>
    %344 = arith.addf %338, %343 : vector<1x256xf32>
    %345 = vector.broadcast %102 : f32 to vector<1x256xf32>
    %346 = arith.mulf %345, %72 : vector<1x256xf32>
    %347 = vector.broadcast %151 : f32 to vector<1x256xf32>
    %348 = arith.mulf %347, %74 : vector<1x256xf32>
    %349 = arith.addf %346, %348 : vector<1x256xf32>
    %350 = arith.addf %344, %349 : vector<1x256xf32>
    %351 = arith.addf %309, %350 : vector<1x256xf32>
    %352 = vector.broadcast %103 : f32 to vector<1x256xf32>
    %353 = arith.mulf %352, %37 : vector<1x256xf32>
    %354 = vector.broadcast %152 : f32 to vector<1x256xf32>
    %355 = arith.mulf %354, %39 : vector<1x256xf32>
    %356 = arith.addf %353, %355 : vector<1x256xf32>
    %357 = vector.broadcast %104 : f32 to vector<1x256xf32>
    %358 = arith.mulf %357, %44 : vector<1x256xf32>
    %359 = vector.broadcast %153 : f32 to vector<1x256xf32>
    %360 = arith.mulf %359, %46 : vector<1x256xf32>
    %361 = arith.addf %358, %360 : vector<1x256xf32>
    %362 = arith.addf %356, %361 : vector<1x256xf32>
    %363 = vector.broadcast %105 : f32 to vector<1x256xf32>
    %364 = arith.mulf %363, %51 : vector<1x256xf32>
    %365 = vector.broadcast %154 : f32 to vector<1x256xf32>
    %366 = arith.mulf %365, %53 : vector<1x256xf32>
    %367 = arith.addf %364, %366 : vector<1x256xf32>
    %368 = arith.addf %362, %367 : vector<1x256xf32>
    %369 = vector.broadcast %106 : f32 to vector<1x256xf32>
    %370 = arith.mulf %369, %25 : vector<1x256xf32>
    %371 = vector.broadcast %155 : f32 to vector<1x256xf32>
    %372 = arith.mulf %371, %26 : vector<1x256xf32>
    %373 = arith.addf %370, %372 : vector<1x256xf32>
    %374 = arith.addf %368, %373 : vector<1x256xf32>
    %375 = vector.broadcast %107 : f32 to vector<1x256xf32>
    %376 = arith.mulf %375, %58 : vector<1x256xf32>
    %377 = vector.broadcast %156 : f32 to vector<1x256xf32>
    %378 = arith.mulf %377, %60 : vector<1x256xf32>
    %379 = arith.addf %376, %378 : vector<1x256xf32>
    %380 = arith.addf %374, %379 : vector<1x256xf32>
    %381 = vector.broadcast %108 : f32 to vector<1x256xf32>
    %382 = arith.mulf %381, %65 : vector<1x256xf32>
    %383 = vector.broadcast %157 : f32 to vector<1x256xf32>
    %384 = arith.mulf %383, %67 : vector<1x256xf32>
    %385 = arith.addf %382, %384 : vector<1x256xf32>
    %386 = arith.addf %380, %385 : vector<1x256xf32>
    %387 = vector.broadcast %109 : f32 to vector<1x256xf32>
    %388 = arith.mulf %387, %72 : vector<1x256xf32>
    %389 = vector.broadcast %158 : f32 to vector<1x256xf32>
    %390 = arith.mulf %389, %74 : vector<1x256xf32>
    %391 = arith.addf %388, %390 : vector<1x256xf32>
    %392 = arith.addf %386, %391 : vector<1x256xf32>
    %c240_i32 = arith.constant 240 : i32
    %393 = tpu.dynamic_rotate %392 by %c240_i32 dim 1 : vector<1x256xf32>, i32 -> vector<1x256xf32>
    %394 = vector.extract_strided_slice %32 {offsets = [4, 0], sizes = [1, 256], strides = [1, 1]} : vector<7x256xi1> to vector<1x256xi1>
    %cst_43 = arith.constant 0.000000e+00 : f32
    %395 = vector.broadcast %cst_43 : f32 to vector<1x256xf32>
    %396 = arith.select %394, %393, %395 : vector<1x256xi1>, vector<1x256xf32>
    %397 = arith.addf %351, %396 : vector<1x256xf32>
    %398 = vector.broadcast %110 : f32 to vector<1x256xf32>
    %399 = arith.mulf %398, %37 : vector<1x256xf32>
    %400 = vector.broadcast %159 : f32 to vector<1x256xf32>
    %401 = arith.mulf %400, %39 : vector<1x256xf32>
    %402 = arith.addf %399, %401 : vector<1x256xf32>
    %403 = vector.broadcast %111 : f32 to vector<1x256xf32>
    %404 = arith.mulf %403, %44 : vector<1x256xf32>
    %405 = vector.broadcast %160 : f32 to vector<1x256xf32>
    %406 = arith.mulf %405, %46 : vector<1x256xf32>
    %407 = arith.addf %404, %406 : vector<1x256xf32>
    %408 = arith.addf %402, %407 : vector<1x256xf32>
    %409 = vector.broadcast %112 : f32 to vector<1x256xf32>
    %410 = arith.mulf %409, %51 : vector<1x256xf32>
    %411 = vector.broadcast %161 : f32 to vector<1x256xf32>
    %412 = arith.mulf %411, %53 : vector<1x256xf32>
    %413 = arith.addf %410, %412 : vector<1x256xf32>
    %414 = arith.addf %408, %413 : vector<1x256xf32>
    %415 = vector.broadcast %113 : f32 to vector<1x256xf32>
    %416 = arith.mulf %415, %25 : vector<1x256xf32>
    %417 = vector.broadcast %162 : f32 to vector<1x256xf32>
    %418 = arith.mulf %417, %26 : vector<1x256xf32>
    %419 = arith.addf %416, %418 : vector<1x256xf32>
    %420 = arith.addf %414, %419 : vector<1x256xf32>
    %421 = vector.broadcast %114 : f32 to vector<1x256xf32>
    %422 = arith.mulf %421, %58 : vector<1x256xf32>
    %423 = vector.broadcast %163 : f32 to vector<1x256xf32>
    %424 = arith.mulf %423, %60 : vector<1x256xf32>
    %425 = arith.addf %422, %424 : vector<1x256xf32>
    %426 = arith.addf %420, %425 : vector<1x256xf32>
    %427 = vector.broadcast %115 : f32 to vector<1x256xf32>
    %428 = arith.mulf %427, %65 : vector<1x256xf32>
    %429 = vector.broadcast %164 : f32 to vector<1x256xf32>
    %430 = arith.mulf %429, %67 : vector<1x256xf32>
    %431 = arith.addf %428, %430 : vector<1x256xf32>
    %432 = arith.addf %426, %431 : vector<1x256xf32>
    %433 = vector.broadcast %116 : f32 to vector<1x256xf32>
    %434 = arith.mulf %433, %72 : vector<1x256xf32>
    %435 = vector.broadcast %165 : f32 to vector<1x256xf32>
    %436 = arith.mulf %435, %74 : vector<1x256xf32>
    %437 = arith.addf %434, %436 : vector<1x256xf32>
    %438 = arith.addf %432, %437 : vector<1x256xf32>
    %c224_i32 = arith.constant 224 : i32
    %439 = tpu.dynamic_rotate %438 by %c224_i32 dim 1 : vector<1x256xf32>, i32 -> vector<1x256xf32>
    %440 = vector.extract_strided_slice %32 {offsets = [5, 0], sizes = [1, 256], strides = [1, 1]} : vector<7x256xi1> to vector<1x256xi1>
    %cst_44 = arith.constant 0.000000e+00 : f32
    %441 = vector.broadcast %cst_44 : f32 to vector<1x256xf32>
    %442 = arith.select %440, %439, %441 : vector<1x256xi1>, vector<1x256xf32>
    %443 = arith.addf %397, %442 : vector<1x256xf32>
    %444 = vector.broadcast %117 : f32 to vector<1x256xf32>
    %445 = arith.mulf %444, %37 : vector<1x256xf32>
    %446 = vector.broadcast %166 : f32 to vector<1x256xf32>
    %447 = arith.mulf %446, %39 : vector<1x256xf32>
    %448 = arith.addf %445, %447 : vector<1x256xf32>
    %449 = vector.broadcast %118 : f32 to vector<1x256xf32>
    %450 = arith.mulf %449, %44 : vector<1x256xf32>
    %451 = vector.broadcast %167 : f32 to vector<1x256xf32>
    %452 = arith.mulf %451, %46 : vector<1x256xf32>
    %453 = arith.addf %450, %452 : vector<1x256xf32>
    %454 = arith.addf %448, %453 : vector<1x256xf32>
    %455 = vector.broadcast %119 : f32 to vector<1x256xf32>
    %456 = arith.mulf %455, %51 : vector<1x256xf32>
    %457 = vector.broadcast %168 : f32 to vector<1x256xf32>
    %458 = arith.mulf %457, %53 : vector<1x256xf32>
    %459 = arith.addf %456, %458 : vector<1x256xf32>
    %460 = arith.addf %454, %459 : vector<1x256xf32>
    %461 = vector.broadcast %120 : f32 to vector<1x256xf32>
    %462 = arith.mulf %461, %25 : vector<1x256xf32>
    %463 = vector.broadcast %169 : f32 to vector<1x256xf32>
    %464 = arith.mulf %463, %26 : vector<1x256xf32>
    %465 = arith.addf %462, %464 : vector<1x256xf32>
    %466 = arith.addf %460, %465 : vector<1x256xf32>
    %467 = vector.broadcast %121 : f32 to vector<1x256xf32>
    %468 = arith.mulf %467, %58 : vector<1x256xf32>
    %469 = vector.broadcast %170 : f32 to vector<1x256xf32>
    %470 = arith.mulf %469, %60 : vector<1x256xf32>
    %471 = arith.addf %468, %470 : vector<1x256xf32>
    %472 = arith.addf %466, %471 : vector<1x256xf32>
    %473 = vector.broadcast %122 : f32 to vector<1x256xf32>
    %474 = arith.mulf %473, %65 : vector<1x256xf32>
    %475 = vector.broadcast %171 : f32 to vector<1x256xf32>
    %476 = arith.mulf %475, %67 : vector<1x256xf32>
    %477 = arith.addf %474, %476 : vector<1x256xf32>
    %478 = arith.addf %472, %477 : vector<1x256xf32>
    %479 = vector.broadcast %123 : f32 to vector<1x256xf32>
    %480 = arith.mulf %479, %72 : vector<1x256xf32>
    %481 = vector.broadcast %172 : f32 to vector<1x256xf32>
    %482 = arith.mulf %481, %74 : vector<1x256xf32>
    %483 = arith.addf %480, %482 : vector<1x256xf32>
    %484 = arith.addf %478, %483 : vector<1x256xf32>
    %c208_i32 = arith.constant 208 : i32
    %485 = tpu.dynamic_rotate %484 by %c208_i32 dim 1 : vector<1x256xf32>, i32 -> vector<1x256xf32>
    %486 = vector.extract_strided_slice %32 {offsets = [6, 0], sizes = [1, 256], strides = [1, 1]} : vector<7x256xi1> to vector<1x256xi1>
    %cst_45 = arith.constant 0.000000e+00 : f32
    %487 = vector.broadcast %cst_45 : f32 to vector<1x256xf32>
    %488 = arith.select %486, %485, %487 : vector<1x256xi1>, vector<1x256xf32>
    %489 = arith.addf %443, %488 : vector<1x256xf32>
    %490 = arith.negf %489 : vector<1x256xf32>
    %491 = math.exp %490 : vector<1x256xf32>
    %cst_46 = arith.constant 1.000000e+00 : f32
    %492 = vector.broadcast %cst_46 : f32 to vector<1x256xf32>
    %493 = arith.addf %492, %491 : vector<1x256xf32>
    %494 = arith.divf %492, %493 : vector<1x256xf32>
    %495 = vector.broadcast %20 : vector<1x16x1xf32> to vector<1x16x256xf32>
    %496 = arith.mulf %0, %495 : vector<1x16x256xf32>
    %497 = vector.shape_cast %494 : vector<1x256xf32> to vector<1x1x256xf32>
    %498 = vector.broadcast %497 : vector<1x1x256xf32> to vector<1x16x256xf32>
    %499 = arith.mulf %496, %498 : vector<1x16x256xf32>
    %c0_47 = arith.constant 0 : index
    %c0_48 = arith.constant 0 : index
    %500 = vector.load %arg8[%c0_47, %c0_48] : memref<16x1xf32, #tpu.memory_space<vmem>>, vector<16x1xf32>
    %501 = vector.shape_cast %500 : vector<16x1xf32> to vector<1x16x1xf32>
    %502 = vector.broadcast %501 : vector<1x16x1xf32> to vector<1x16x256xf32>
    %503 = arith.mulf %499, %502 : vector<1x16x256xf32>
    %c0_49 = arith.constant 0 : index
    %c0_50 = arith.constant 0 : index
    %504 = vector.load %arg9[%c0_49, %c0_50] : memref<16x1xf32, #tpu.memory_space<vmem>>, vector<16x1xf32>
    %505 = vector.shape_cast %504 : vector<16x1xf32> to vector<1x16x1xf32>
    %506 = vector.broadcast %505 : vector<1x16x1xf32> to vector<1x16x256xf32>
    %507 = arith.addf %503, %506 : vector<1x16x256xf32>
    %508 = arith.negf %507 : vector<1x16x256xf32>
    %509 = math.exp %508 : vector<1x16x256xf32>
    %cst_51 = arith.constant 1.000000e+00 : f32
    %510 = vector.broadcast %cst_51 : f32 to vector<1x16x256xf32>
    %511 = arith.addf %510, %509 : vector<1x16x256xf32>
    %512 = arith.divf %510, %511 : vector<1x16x256xf32>
    %513 = arith.mulf %499, %512 : vector<1x16x256xf32>
    %c0_52 = arith.constant 0 : index
    %c0_53 = arith.constant 0 : index
    %c0_54 = arith.constant 0 : index
    %514 = vector.load %arg10[%c0_52, %c0_53, %c0_54] : memref<1x16x256xf32, #tpu.memory_space<vmem>>, vector<1x16x256xf32>
    tpu.vector_store %arg10[%c0_52, %c0_53, %c0_54], %513 {strides = array<i32>} : memref<1x16x256xf32, #tpu.memory_space<vmem>>, vector<1x16x256xf32>,
    return
  }
  func.func @transform_0(%arg0: i32) -> (i32, i32, i32) {
    %c0_i32 = arith.constant 0 : i32
    %c0_i32_0 = arith.constant 0 : i32
    %c0_i32_1 = arith.constant 0 : i32
    return %arg0, %c0_i32, %c0_i32_0 : i32, i32, i32
  }
  func.func @transform_1(%arg0: i32) -> (i32, i32) {
    %c0_i32 = arith.constant 0 : i32
    %c0_i32_0 = arith.constant 0 : i32
    %c0_i32_1 = arith.constant 0 : i32
    return %c0_i32, %c0_i32_0 : i32, i32
  }
  func.func @transform_2(%arg0: i32) -> (i32, i32) {
    %c0_i32 = arith.constant 0 : i32
    %c0_i32_0 = arith.constant 0 : i32
    %c0_i32_1 = arith.constant 0 : i32
    return %c0_i32, %c0_i32_0 : i32, i32
  }
  func.func @transform_3(%arg0: i32) -> i32 {
    %c0_i32 = arith.constant 0 : i32
    %c0_i32_0 = arith.constant 0 : i32
    return %c0_i32 : i32
  }
  func.func @transform_4(%arg0: i32) -> (i32, i32) {
    %c0_i32 = arith.constant 0 : i32
    %c0_i32_0 = arith.constant 0 : i32
    %c0_i32_1 = arith.constant 0 : i32
    return %c0_i32, %c0_i32_0 : i32, i32
  }
  func.func @transform_5(%arg0: i32) -> (i32, i32) {
    %c0_i32 = arith.constant 0 : i32
    %c0_i32_0 = arith.constant 0 : i32
    %c0_i32_1 = arith.constant 0 : i32
    return %c0_i32, %c0_i32_0 : i32, i32
  }
  func.func @transform_6(%arg0: i32) -> (i32, i32) {
    %c0_i32 = arith.constant 0 : i32
    %c0_i32_0 = arith.constant 0 : i32
    %c0_i32_1 = arith.constant 0 : i32
    return %c0_i32, %c0_i32_0 : i32, i32
  }
  func.func @transform_7(%arg0: i32) -> (i32, i32) {
    %c0_i32 = arith.constant 0 : i32
    %c0_i32_0 = arith.constant 0 : i32
    %c0_i32_1 = arith.constant 0 : i32
    return %c0_i32, %c0_i32_0 : i32, i32
  }
  func.func @transform_8(%arg0: i32) -> (i32, i32) {
    %c0_i32 = arith.constant 0 : i32
    %c0_i32_0 = arith.constant 0 : i32
    %c0_i32_1 = arith.constant 0 : i32
    return %c0_i32, %c0_i32_0 : i32, i32
  }
  func.func @transform_9(%arg0: i32) -> (i32, i32, i32) {
    %c0_i32 = arith.constant 0 : i32
    %c0_i32_0 = arith.constant 0 : i32
    %c0_i32_1 = arith.constant 0 : i32
    return %arg0, %c0_i32, %c0_i32_0 : i32, i32, i32
  }
}

</mosaic_0001>

<llo_original>
// kernel: tpu_custom_call.1
$region0: #{tpu_custom_call.1}
  #allocation0 [shape = 'u32[]', space=smem, size = 0x4, offset = 0x4, fixed_abs, tag = 'smem constant byte address 0x4 - core index']
  #allocation1 [shape = 'u32[144,128]{1,0:T(1,128)}', space=vmem, size = 0x12000, scoped, tag = 'internal scratch']
  %s0 = inlined_call_operand.hbm [shape: f32[2,16,256], index: 0, kind: input, shape index: {}]
  %s1 = inlined_call_operand.vmem [shape: f32[16,2], index: 1, kind: input, shape index: {}]
  %s2 = inlined_call_operand.vmem [shape: f32[2,16], index: 2, kind: input, shape index: {}]
  %s3 = inlined_call_operand.vmem [shape: f32[98], index: 3, kind: input, shape index: {}]
  %s4 = inlined_call_operand.vmem [shape: f32[7,256], index: 4, kind: input, shape index: {}]
  %s5 = inlined_call_operand.vmem [shape: f32[7,256], index: 5, kind: input, shape index: {}]
  %s6 = inlined_call_operand.vmem [shape: f32[1,256], index: 6, kind: input, shape index: {}]
  %s7 = inlined_call_operand.vmem [shape: f32[16,1], index: 7, kind: input, shape index: {}]
  %s8 = inlined_call_operand.vmem [shape: f32[16,1], index: 8, kind: input, shape index: {}]
  %s9 = inlined_call_operand.hbm [shape: f32[2,16,256], index: 9, kind: output, shape index: {}]
  %s10 = sld [smem:[#allocation0]]
  $region77: #{tpu_custom_call.1} parent=0
    _
  %s12 = ssub.s32 1, %s10
  %s13 = scalar_select 0, %s12, %s10
  $region1: #{tpu_custom_call.1} parent=0
    #allocation2 [shape = 'u8[32768]{0}', space=vmem, size = 0x8000, scoped, tag = 'input window, operand 0']
    #allocation3 [shape = 's32[2]{0}', space=sflag, size = 0x8, scoped, tag = 'scoped memory for tpu_custom_call.1']
    #allocation4 [shape = 's32[2]{0}', space=sflag, size = 0x8, scoped, tag = 'scoped memory for tpu_custom_call.1']
    #allocation5 [shape = 's32[2]{0}', space=sflag, size = 0x8, scoped, tag = 'scoped memory for tpu_custom_call.1']
    #allocation6 [shape = 'u8[512]{0}', space=smem, size = 0x200, scoped, tag = 'input window, operand 3, single buffered']
    #allocation7 [shape = 'u8[32768]{0}', space=vmem, size = 0x8000, scoped, tag = 'output window, operand 0']
    %14 = vsyncpa [#allocation3], 0
    %s15 = scalar_lea.sflag [#allocation3], 1
    %16 = vsyncpa %s15, 0
    %17 = vsyncpa [#allocation5], 0
    %18 = vsyncpa [#allocation4], 0
    %s19 = scalar_lea.sflag [#allocation4], 1
    %20 = vsyncpa %s19, 0
    loop: start=0, step=1, limit=4
    $region2: #{tpu_custom_call.1} parent=1 // loop_pre_header
      _
    $region3: #{tpu_custom_call.1} parent=1 // loop_header
      %s22 = sphi 0, %s26
      %p23 = scmp.ge.s32.totalorder %s22, 4
      %s32 = sphi 0, %s34
      %s35 = sphi 0, %s32
      %s36 = sphi 0, %s35
      %s52 = sphi 0, %s36
      %s56 = sphi 0, %s56
      %s58 = sphi 0, %s56
      %s59 = sphi 0, %s58
      %s73 = sphi 0, %s59
      %s77 = sphi 0, %s77
      %s79 = sphi 0, %s77
      %s80 = sphi 0, %s79
      %s94 = sphi 0, %s80
      %s98 = sphi 0, %s98
      %s100 = sphi 0, %s98
      %s101 = sphi 0, %s100
      %s115 = sphi 0, %s101
      %s119 = sphi 0, %s119
      %s121 = sphi 0, %s119
      %s122 = sphi 0, %s121
      %s136 = sphi 0, %s122
      %s140 = sphi 0, %s140
      %s142 = sphi 0, %s140
      %s143 = sphi 0, %s142
      %s157 = sphi 0, %s143
      %s161 = sphi 0, %s161
      %s163 = sphi 0, %s161
      %s164 = sphi 0, %s163
      %s178 = sphi 0, %s164
      %s182 = sphi 0, %s182
      %s184 = sphi 0, %s182
      %s185 = sphi 0, %s184
      %s199 = sphi 0, %s185
      %s203 = sphi 0, %s203
      %s205 = sphi 0, %s203
      %s206 = sphi 0, %s205
      %s220 = sphi 0, %s206
      %s226 = sphi 0, %s228
      %s229 = sphi 0, %s226
      %s230 = sphi 0, %s229
      %s246 = sphi 0, %s230
    $region4: #{tpu_custom_call.1} parent=1 // loop_header_branch
      %25 = sbr.rel (%p23) target = $region8
    $region5: #{tpu_custom_call.1} parent=1 // loop_body
      %s27 = ssub.s32 %s22, 1
      %s28 = ssub.s32 %s22, 2
      %s29 = sadd.s32 %s22, 1
      %s30 = ssub.s32 %s22, %s29
      %p31 = scmp.eq.s32.totalorder %s30, 0
      %s33 = sadd.s32 %s32, 1
      %s34 = scalar_select %p31, %s32, %s33
      %p37 = pneg %p31
      %p38 = scmp.eq.s32.totalorder %s22, 1
      %p39 = por %p37, %p38
      %p40 = scmp.ne.s32.totalorder %s32, %s35
      %p41 = scmp.eq.s32.totalorder %s22, 0
      %p42 = por %p40, %p41
      %p43 = scmp.ne.s32.totalorder %s32, %s35
      %p44 = scmp.eq.s32.totalorder %s27, 1
      %p45 = por %p43, %p44
      %p46 = scmp.ne.s32.totalorder %s35, %s36
      %p47 = scmp.eq.s32.totalorder %s27, 0
      %p48 = por %p46, %p47
      %p49 = scmp.ne.s32.totalorder %s35, %s36
      %p50 = scmp.eq.s32.totalorder %s28, 1
      %p51 = por %p49, %p50
      %p53 = scmp.ne.s32.totalorder %s36, %s52
      %p54 = scmp.eq.s32.totalorder %s28, 0
      %p55 = por %p53, %p54
      %s57 = sadd.s32 %s56, 1
      %p60 = scmp.eq.s32.totalorder %s22, 1
      %p61 = scmp.ne.s32.totalorder %s56, %s58
      %p62 = scmp.eq.s32.totalorder %s22, 0
      %p63 = por %p61, %p62
      %p64 = scmp.ne.s32.totalorder %s56, %s58
      %p65 = scmp.eq.s32.totalorder %s27, 1
      %p66 = por %p64, %p65
      %p67 = scmp.ne.s32.totalorder %s58, %s59
      %p68 = scmp.eq.s32.totalorder %s27, 0
      %p69 = por %p67, %p68
      %p70 = scmp.ne.s32.totalorder %s58, %s59
      %p71 = scmp.eq.s32.totalorder %s28, 1
      %p72 = por %p70, %p71
      %p74 = scmp.ne.s32.totalorder %s59, %s73
      %p75 = scmp.eq.s32.totalorder %s28, 0
      %p76 = por %p74, %p75
      %s78 = sadd.s32 %s77, 1
      %p81 = scmp.eq.s32.totalorder %s22, 1
      %p82 = scmp.ne.s32.totalorder %s77, %s79
      %p83 = scmp.eq.s32.totalorder %s22, 0
      %p84 = por %p82, %p83
      %p85 = scmp.ne.s32.totalorder %s77, %s79
      %p86 = scmp.eq.s32.totalorder %s27, 1
      %p87 = por %p85, %p86
      %p88 = scmp.ne.s32.totalorder %s79, %s80
      %p89 = scmp.eq.s32.totalorder %s27, 0
      %p90 = por %p88, %p89
      %p91 = scmp.ne.s32.totalorder %s79, %s80
      %p92 = scmp.eq.s32.totalorder %s28, 1
      %p93 = por %p91, %p92
      %p95 = scmp.ne.s32.totalorder %s80, %s94
      %p96 = scmp.eq.s32.totalorder %s28, 0
      %p97 = por %p95, %p96
      %s99 = sadd.s32 %s98, 1
      %p102 = scmp.eq.s32.totalorder %s22, 1
      %p103 = scmp.ne.s32.totalorder %s98, %s100
      %p104 = scmp.eq.s32.totalorder %s22, 0
      %p105 = por %p103, %p104
      %p106 = scmp.ne.s32.totalorder %s98, %s100
      %p107 = scmp.eq.s32.totalorder %s27, 1
      %p108 = por %p106, %p107
      %p109 = scmp.ne.s32.totalorder %s100, %s101
      %p110 = scmp.eq.s32.totalorder %s27, 0
      %p111 = por %p109, %p110
      %p112 = scmp.ne.s32.totalorder %s100, %s101
      %p113 = scmp.eq.s32.totalorder %s28, 1
      %p114 = por %p112, %p113
      %p116 = scmp.ne.s32.totalorder %s101, %s115
      %p117 = scmp.eq.s32.totalorder %s28, 0
      %p118 = por %p116, %p117
      %s120 = sadd.s32 %s119, 1
      %p123 = scmp.eq.s32.totalorder %s22, 1
      %p124 = scmp.ne.s32.totalorder %s119, %s121
      %p125 = scmp.eq.s32.totalorder %s22, 0
      %p126 = por %p124, %p125
      %p127 = scmp.ne.s32.totalorder %s119, %s121
      %p128 = scmp.eq.s32.totalorder %s27, 1
      %p129 = por %p127, %p128
      %p130 = scmp.ne.s32.totalorder %s121, %s122
      %p131 = scmp.eq.s32.totalorder %s27, 0
      %p132 = por %p130, %p131
      %p133 = scmp.ne.s32.totalorder %s121, %s122
      %p134 = scmp.eq.s32.totalorder %s28, 1
      %p135 = por %p133, %p134
      %p137 = scmp.ne.s32.totalorder %s122, %s136
      %p138 = scmp.eq.s32.totalorder %s28, 0
      %p139 = por %p137, %p138
      %s141 = sadd.s32 %s140, 1
      %p144 = scmp.eq.s32.totalorder %s22, 1
      %p145 = scmp.ne.s32.totalorder %s140, %s142
      %p146 = scmp.eq.s32.totalorder %s22, 0
      %p147 = por %p145, %p146
      %p148 = scmp.ne.s32.totalorder %s140, %s142
      %p149 = scmp.eq.s32.totalorder %s27, 1
      %p150 = por %p148, %p149
      %p151 = scmp.ne.s32.totalorder %s142, %s143
      %p152 = scmp.eq.s32.totalorder %s27, 0
      %p153 = por %p151, %p152
      %p154 = scmp.ne.s32.totalorder %s142, %s143
      %p155 = scmp.eq.s32.totalorder %s28, 1
      %p156 = por %p154, %p155
      %p158 = scmp.ne.s32.totalorder %s143, %s157
      %p159 = scmp.eq.s32.totalorder %s28, 0
      %p160 = por %p158, %p159
      %s162 = sadd.s32 %s161, 1
      %p165 = scmp.eq.s32.totalorder %s22, 1
      %p166 = scmp.ne.s32.totalorder %s161, %s163
      %p167 = scmp.eq.s32.totalorder %s22, 0
      %p168 = por %p166, %p167
      %p169 = scmp.ne.s32.totalorder %s161, %s163
      %p170 = scmp.eq.s32.totalorder %s27, 1
      %p171 = por %p169, %p170
      %p172 = scmp.ne.s32.totalorder %s163, %s164
      %p173 = scmp.eq.s32.totalorder %s27, 0
      %p174 = por %p172, %p173
      %p175 = scmp.ne.s32.totalorder %s163, %s164
      %p176 = scmp.eq.s32.totalorder %s28, 1
      %p177 = por %p175, %p176
      %p179 = scmp.ne.s32.totalorder %s164, %s178
      %p180 = scmp.eq.s32.totalorder %s28, 0
      %p181 = por %p179, %p180
      %s183 = sadd.s32 %s182, 1
      %p186 = scmp.eq.s32.totalorder %s22, 1
      %p187 = scmp.ne.s32.totalorder %s182, %s184
      %p188 = scmp.eq.s32.totalorder %s22, 0
      %p189 = por %p187, %p188
      %p190 = scmp.ne.s32.totalorder %s182, %s184
      %p191 = scmp.eq.s32.totalorder %s27, 1
      %p192 = por %p190, %p191
      %p193 = scmp.ne.s32.totalorder %s184, %s185
      %p194 = scmp.eq.s32.totalorder %s27, 0
      %p195 = por %p193, %p194
      %p196 = scmp.ne.s32.totalorder %s184, %s185
      %p197 = scmp.eq.s32.totalorder %s28, 1
      %p198 = por %p196, %p197
      %p200 = scmp.ne.s32.totalorder %s185, %s199
      %p201 = scmp.eq.s32.totalorder %s28, 0
      %p202 = por %p200, %p201
      %s204 = sadd.s32 %s203, 1
      %p207 = scmp.eq.s32.totalorder %s22, 1
      %p208 = scmp.ne.s32.totalorder %s203, %s205
      %p209 = scmp.eq.s32.totalorder %s22, 0
      %p210 = por %p208, %p209
      %p211 = scmp.ne.s32.totalorder %s203, %s205
      %p212 = scmp.eq.s32.totalorder %s27, 1
      %p213 = por %p211, %p212
      %p214 = scmp.ne.s32.totalorder %s205, %s206
      %p215 = scmp.eq.s32.totalorder %s27, 0
      %p216 = por %p214, %p215
      %p217 = scmp.ne.s32.totalorder %s205, %s206
      %p218 = scmp.eq.s32.totalorder %s28, 1
      %p219 = por %p217, %p218
      %p221 = scmp.ne.s32.totalorder %s206, %s220
      %p222 = scmp.eq.s32.totalorder %s28, 0
      %p223 = por %p221, %p222
      %s224 = ssub.s32 %s22, %s29
      %p225 = scmp.eq.s32.totalorder %s224, 0
      %s227 = sadd.s32 %s226, 1
      %s228 = scalar_select %p225, %s226, %s227
      %p231 = pneg %p225
      %p232 = scmp.eq.s32.totalorder %s22, 1
      %p233 = por %p231, %p232
      %p234 = scmp.ne.s32.totalorder %s226, %s229
      %p235 = scmp.eq.s32.totalorder %s22, 0
      %p236 = por %p234, %p235
      %p237 = scmp.ne.s32.totalorder %s226, %s229
      %p238 = scmp.eq.s32.totalorder %s27, 1
      %p239 = por %p237, %p238
      %p240 = scmp.ne.s32.totalorder %s229, %s230
      %p241 = scmp.eq.s32.totalorder %s27, 0
      %p242 = por %p240, %p241
      %p243 = scmp.ne.s32.totalorder %s229, %s230
      %p244 = scmp.eq.s32.totalorder %s28, 1
      %p245 = por %p243, %p244
      %p247 = scmp.ne.s32.totalorder %s230, %s246
      %p248 = scmp.eq.s32.totalorder %s28, 0
      %p249 = por %p247, %p248
      %p250 = scmp.le.s32.totalorder 1, %s22
      %p251 = scmp.lt.s32.totalorder %s22, 3
      %p252 = pnand %p250, %p251
      %p253 = pneg %p252
      // Predicated region
      $region9: #{tpu_custom_call.1} parent=5 // pred_check
        _
      $region10: #{tpu_custom_call.1} parent=5 // pred_check_branch
        %255 = sbr.rel (%p252) target = $region12
      $region11: #{tpu_custom_call.1} parent=5 // pred_region
        %s256 = ssub.s32 %s22, 1
        // Predicated region
        $region13: #{tpu_custom_call.1} parent=11 // pred_check
          %p257 = pneg %p69
        $region14: #{tpu_custom_call.1} parent=11 // pred_check_branch
          %259 = sbr.rel (%p257) target = $region16
        $region15: #{tpu_custom_call.1} parent=11 // pred_region
          _
        $region16: #{tpu_custom_call.1} parent=11 // pred_fallthru
          _
        // Predicated region
        $region17: #{tpu_custom_call.1} parent=11 // pred_check
          %p260 = pneg %p90
        $region18: #{tpu_custom_call.1} parent=11 // pred_check_branch
          %262 = sbr.rel (%p260) target = $region20
        $region19: #{tpu_custom_call.1} parent=11 // pred_region
          _
        $region20: #{tpu_custom_call.1} parent=11 // pred_fallthru
          _
        // Predicated region
        $region21: #{tpu_custom_call.1} parent=11 // pred_check
          %p263 = pneg %p111
        $region22: #{tpu_custom_call.1} parent=11 // pred_check_branch
          %265 = sbr.rel (%p263) target = $region24
        $region23: #{tpu_custom_call.1} parent=11 // pred_region
          %s267 = ssub.s32 16, 16
          %268 = vsyncadd [#allocation5], %s267
          %s270 = sshll.u32 %s3, 4
          %s271 = int_to_ptr.vmem [resolvable:$true] %s270
          %273 = dma.vmem_to_smem %s271, 16, [#allocation6], [#allocation5]
        $region24: #{tpu_custom_call.1} parent=11 // pred_fallthru
          _
        // Predicated region
        $region25: #{tpu_custom_call.1} parent=11 // pred_check
          %p274 = pneg %p132
        $region26: #{tpu_custom_call.1} parent=11 // pred_check_branch
          %276 = sbr.rel (%p274) target = $region28
        $region27: #{tpu_custom_call.1} parent=11 // pred_region
          _
        $region28: #{tpu_custom_call.1} parent=11 // pred_fallthru
          _
        // Predicated region
        $region29: #{tpu_custom_call.1} parent=11 // pred_check
          %p277 = pneg %p153
        $region30: #{tpu_custom_call.1} parent=11 // pred_check_branch
          %279 = sbr.rel (%p277) target = $region32
        $region31: #{tpu_custom_call.1} parent=11 // pred_region
          _
        $region32: #{tpu_custom_call.1} parent=11 // pred_fallthru
          _
        // Predicated region
        $region33: #{tpu_custom_call.1} parent=11 // pred_check
          %p280 = pneg %p174
        $region34: #{tpu_custom_call.1} parent=11 // pred_check_branch
          %282 = sbr.rel (%p280) target = $region36
        $region35: #{tpu_custom_call.1} parent=11 // pred_region
          _
        $region36: #{tpu_custom_call.1} parent=11 // pred_fallthru
          _
        // Predicated region
        $region37: #{tpu_custom_call.1} parent=11 // pred_check
          %p283 = pneg %p195
        $region38: #{tpu_custom_call.1} parent=11 // pred_check_branch
          %285 = sbr.rel (%p283) target = $region40
        $region39: #{tpu_custom_call.1} parent=11 // pred_region
          _
        $region40: #{tpu_custom_call.1} parent=11 // pred_fallthru
          _
        // Predicated region
        $region41: #{tpu_custom_call.1} parent=11 // pred_check
          %p286 = pneg %p216
        $region42: #{tpu_custom_call.1} parent=11 // pred_check_branch
          %288 = sbr.rel (%p286) target = $region44
        $region43: #{tpu_custom_call.1} parent=11 // pred_region
          _
        $region44: #{tpu_custom_call.1} parent=11 // pred_fallthru
          _
      $region12: #{tpu_custom_call.1} parent=5 // pred_fallthru
        _
      %p289 = scmp.lt.s32.totalorder %s22, 2
      // Predicated region
      $region45: #{tpu_custom_call.1} parent=5 // pred_check
        %p290 = pneg %p289
      $region46: #{tpu_custom_call.1} parent=5 // pred_check_branch
        %292 = sbr.rel (%p290) target = $region48
      $region47: #{tpu_custom_call.1} parent=5 // pred_region
        // Predicated region
        $region49: #{tpu_custom_call.1} parent=47 // pred_check
          %p293 = pneg %p42
        $region50: #{tpu_custom_call.1} parent=47 // pred_check_branch
          %295 = sbr.rel (%p293) target = $region52
        $region51: #{tpu_custom_call.1} parent=47 // pred_region
          %s296 = sand.u32 %s32, 1
          %s297 = scalar_lea.sflag [#allocation3], %s296
          %s298 = sand.u32 %s32, 1
          %s299 = smul.addr %s298, 32
          %s300 = scalar_lea.vmem [#allocation2], %s299
          %s302 = ssub.s32 512, 512
          %303 = vsyncadd %s297, %s302
          %s304 = smul.addr %s22, 4
          %s305 = smul.addr %s304, 128
          %s306 = scalar_lea.hbm %s0, %s305
          %s307 = sshll.u32 %s300, 4
          %s308 = int_to_ptr.vmem [resolvable:$true] %s307
          %313 = dma.hbm_to_vmem [thread:$0]  %s306, 512, %s308, %s297, 256, 256, 16
        $region52: #{tpu_custom_call.1} parent=47 // pred_fallthru
          _
      $region48: #{tpu_custom_call.1} parent=5 // pred_fallthru
        _
      %p314 = scmp.le.s32.totalorder 1, %s22
      %p315 = scmp.lt.s32.totalorder %s22, 3
      %p316 = pnand %p314, %p315
      %p317 = pneg %p316
      // Predicated region
      $region53: #{tpu_custom_call.1} parent=5 // pred_check
        _
      $region54: #{tpu_custom_call.1} parent=5 // pred_check_branch
        %319 = sbr.rel (%p316) target = $region56
      $region55: #{tpu_custom_call.1} parent=5 // pred_region
        %s320 = ssub.s32 %s22, 1
        %s321 = sand.u32 %s35, 1
        %s322 = scalar_lea.sflag [#allocation3], %s321
        %s323 = sand.u32 %s35, 1
        %s324 = smul.addr %s323, 32
        %s325 = scalar_lea.vmem [#allocation2], %s324
        // Predicated region
        $region57: #{tpu_custom_call.1} parent=55 // pred_check
          %p326 = pneg %p48
        $region58: #{tpu_custom_call.1} parent=55 // pred_check_branch
          %328 = sbr.rel (%p326) target = $region60
        $region59: #{tpu_custom_call.1} parent=55 // pred_region
          %329 = dma.done %s322, 512
        $region60: #{tpu_custom_call.1} parent=55 // pred_fallthru
          _
        // Predicated region
        $region61: #{tpu_custom_call.1} parent=55 // pred_check
          %p330 = pneg %p111
        $region62: #{tpu_custom_call.1} parent=55 // pred_check_branch
          %332 = sbr.rel (%p330) target = $region64
        $region63: #{tpu_custom_call.1} parent=55 // pred_region
          %333 = dma.done [#allocation5], 16
        $region64: #{tpu_custom_call.1} parent=55 // pred_fallthru
          _
        %334 = sfence
        %s335 = sand.u32 %s35, 1
        %s336 = scalar_lea.sflag [#allocation3], %s335
        %s337 = sand.u32 %s35, 1
        %s338 = smul.addr %s337, 32
        %s339 = scalar_lea.vmem [#allocation2], %s338
        %p340 = pneg %p48
        %p341 = pneg %p45
        %p342 = pneg %p69
        %p343 = pneg %p66
        %p344 = pneg %p90
        %p345 = pneg %p87
        %p346 = pneg %p111
        %p347 = pneg %p108
        %p348 = pneg %p132
        %p349 = pneg %p129
        %p350 = pneg %p153
        %p351 = pneg %p150
        %p352 = pneg %p174
        %p353 = pneg %p171
        %p354 = pneg %p195
        %p355 = pneg %p192
        %p356 = pneg %p216
        %p357 = pneg %p213
        %p358 = pneg %p242
        %p359 = pneg %p239
        %s360 = sand.u32 %s229, 1
        %s361 = scalar_lea.sflag [#allocation4], %s360
        %s362 = sand.u32 %s229, 1
        %s363 = smul.addr %s362, 32
        %s364 = scalar_lea.vmem [#allocation7], %s363
        %v365 = vld [vmem:[%s325] sm:$0xff]
        %v366 = vld [vmem:[%s325 + $0x8] sm:$0xff]
        %v367 = vld [vmem:[%s325 + $0x10] sm:$0xff]
        %v368 = vld [vmem:[%s325 + $0x18] sm:$0xff]
        %v369 = vadd.f32 %v365, %v366
        %370 = vadd.xlane.f32.xlu0 %v369
        %v371 = vpop.xlane.xlu0 %370
        %v372 = vadd.f32 %v367, %v368
        %373 = vadd.xlane.f32.xlu0 %v372
        %v374 = vpop.xlane.xlu0 %373
        %v375 = vmul.f32 %v371, 0.00390625
        %v376 = vmul.f32 %v374, 0.00390625
        %v377 = vmax.f32 %v365, %v366
        %378 = vmax.xlane.f32.xlu0 %v377
        %v379 = vpop.xlane.xlu0 %378
        %v380 = vmax.f32 %v367, %v368
        %381 = vmax.xlane.f32.xlu0 %v380
        %v382 = vpop.xlane.xlu0 %381
        %v385 = vlaneseq
        %v386 = vand.u32 %v385, 127
        %v387 = vlaneseq
        %v388 = vshrl.u32 %v387, 7
        %v389 = vsub.s32 %v386, %v388
        %v390 = vrot.slane %v375, %v389
        %v391 = vadd.s32 %v386, 4294967288
        %v392 = vlaneseq
        %v393 = vshrl.u32 %v392, 7
        %v394 = vsub.s32 %v391, %v393
        %v395 = vrot.slane %v376, %v394
        %vm396 = vcmask 130112
        %v397 = vsel %vm396, %v395, %v390
        %v401 = vlaneseq
        %v402 = vshrl.u32 %v401, 7
        %v403 = vsub.s32 %v386, %v402
        %v404 = vrot.slane %v379, %v403
        %v405 = vlaneseq
        %v406 = vshrl.u32 %v405, 7
        %v407 = vsub.s32 %v391, %v406
        %v408 = vrot.slane %v382, %v407
        %v409 = vsel %vm396, %v408, %v404
        %vm411 = vcmask 1040384
        %v412 = vsel %vm411, %v397, %v409
        %v413 = vld [vmem:[%s1] sm:$0xff]
        %v414 = vld [vmem:[%s1 + $0x8] sm:$0xff]
        %vm415 = vcmask 130048
        %v417 = vsel %vm415, %v412, 0
        %419 = vmatprep.subr.mxu0 0.0
        %420 = vmatpush1.msra.mxu0 %v413
        %421 = vmatprep.subr.mxu0 0.0
        %422 = vmatpush1.msra.mxu0 %v414
        %423 = vmatprep.subr.mxu0 0.0
        %424 = vmatpush1.msra.mxu0 0.0
        %425 = vmatprep.subr.mxu0 0.0
        %426 = vmatpush1.msra.mxu0 0.0
        %427 = vmatprep.subr.mxu0 0.0
        %428 = vmatpush1.msra.mxu0 0.0
        %429 = vmatprep.subr.mxu0 0.0
        %430 = vmatpush1.msra.mxu0 0.0
        %431 = vmatprep.subr.mxu0 0.0
        %432 = vmatpush1.msra.mxu0 0.0
        %433 = vmatprep.subr.mxu0 0.0
        %434 = vmatpush1.msra.mxu0 0.0
        %435 = vmatprep.subr.mxu0 0.0
        %436 = vmatpush1.msra.mxu0 0.0
        %437 = vmatprep.subr.mxu0 0.0
        %438 = vmatpush1.msra.mxu0 0.0
        %439 = vmatprep.subr.mxu0 0.0
        %440 = vmatpush1.msra.mxu0 0.0
        %441 = vmatprep.subr.mxu0 0.0
        %442 = vmatpush1.msra.mxu0 0.0
        %443 = vmatprep.subr.mxu0 0.0
        %444 = vmatpush1.msra.mxu0 0.0
        %445 = vmatprep.subr.mxu0 0.0
        %446 = vmatpush1.msra.mxu0 0.0
        %447 = vmatprep.subr.mxu0 0.0
        %448 = vmatpush1.msra.mxu0 0.0
        %449 = vmatprep.subr.mxu0 0.0
        %450 = vmatpush1.msra.mxu0 0.0
        %451 = vmatprep.subr.mxu0 0.0
        %452 = vmatpush1.msra.mxu0 0.0
        %453 = vmatprep.subr.mxu0 0.0
        %454 = vmatpush1.msra.mxu0 0.0
        %455 = vmatprep.subr.mxu0 0.0
        %456 = vmatpush1.msra.mxu0 0.0
        %457 = vmatprep.subr.mxu0 0.0
        %458 = vmatpush1.msra.mxu0 0.0
        %459 = vmatprep.subr.mxu0 0.0
        %460 = vmatpush1.msra.mxu0 0.0
        %461 = vmatprep.subr.mxu0 0.0
        %462 = vmatpush1.msra.mxu0 0.0
        %463 = vmatprep.subr.mxu0 0.0
        %464 = vmatpush1.msra.mxu0 0.0
        %465 = vmatprep.subr.mxu0 0.0
        %466 = vmatpush1.msra.mxu0 0.0
        %467 = vmatprep.subr.mxu0 0.0
        %468 = vmatpush1.msra.mxu0 0.0
        %469 = vmatprep.subr.mxu0 0.0
        %470 = vmatpush1.msra.mxu0 0.0
        %471 = vmatprep.subr.mxu0 0.0
        %472 = vmatpush1.msra.mxu0 0.0
        %473 = vmatprep.subr.mxu0 0.0
        %474 = vmatpush1.msra.mxu0 0.0
        %475 = vmatprep.subr.mxu0 0.0
        %476 = vmatpush1.msra.mxu0 0.0
        %477 = vmatprep.subr.mxu0 0.0
        %478 = vmatpush1.msra.mxu0 0.0
        %479 = vmatprep.subr.mxu0 0.0
        %480 = vmatpush1.msra.mxu0 0.0
        %481 = vmatprep.subr.mxu0 0.0
        %482 = vmatpush1.msra.mxu0 0.0
        %483 = vmatprep.mubr.f32.mxu0 0.0
        %484 = vmatmul.mubr.f32.gmra.mrb[0].mxu0 %v417
        %v485 = vpop.f32.mrb[0].mxu0
        %v486 = vadd.f32 0.0, %v485
        %v487 = vpop.f32.mrb[0].mxu0
        %488 = vdwg.mxu0
        %v489 = vmax.f32 %v486, 0.0
        %v490 = vld [vmem:[%s2] sm:$0x3]
        %vm491 = vcmask 15360
        %v493 = vsel %vm491, %v489, 0
        %vm495 = vcmask 1041408
        %v497 = vsel %vm495, %v490, 0
        %499 = vmatprep.subr.mxu0 0.0
        %500 = vmatpush1.msra.mxu0 %v497
        %501 = vmatprep.subr.mxu0 0.0
        %502 = vmatpush1.msra.mxu0 0.0
        %503 = vmatprep.subr.mxu0 0.0
        %504 = vmatpush1.msra.mxu0 0.0
        %505 = vmatprep.subr.mxu0 0.0
        %506 = vmatpush1.msra.mxu0 0.0
        %507 = vmatprep.subr.mxu0 0.0
        %508 = vmatpush1.msra.mxu0 0.0
        %509 = vmatprep.subr.mxu0 0.0
        %510 = vmatpush1.msra.mxu0 0.0
        %511 = vmatprep.subr.mxu0 0.0
        %512 = vmatpush1.msra.mxu0 0.0
        %513 = vmatprep.subr.mxu0 0.0
        %514 = vmatpush1.msra.mxu0 0.0
        %515 = vmatprep.subr.mxu0 0.0
        %516 = vmatpush1.msra.mxu0 0.0
        %517 = vmatprep.subr.mxu0 0.0
        %518 = vmatpush1.msra.mxu0 0.0
        %519 = vmatprep.subr.mxu0 0.0
        %520 = vmatpush1.msra.mxu0 0.0
        %521 = vmatprep.subr.mxu0 0.0
        %522 = vmatpush1.msra.mxu0 0.0
        %523 = vmatprep.subr.mxu0 0.0
        %524 = vmatpush1.msra.mxu0 0.0
        %525 = vmatprep.subr.mxu0 0.0
        %526 = vmatpush1.msra.mxu0 0.0
        %527 = vmatprep.subr.mxu0 0.0
        %528 = vmatpush1.msra.mxu0 0.0
        %529 = vmatprep.subr.mxu0 0.0
        %530 = vmatpush1.msra.mxu0 0.0
        %531 = vmatprep.subr.mxu0 0.0
        %532 = vmatpush1.msra.mxu0 0.0
        %533 = vmatprep.subr.mxu0 0.0
        %534 = vmatpush1.msra.mxu0 0.0
        %535 = vmatprep.subr.mxu0 0.0
        %536 = vmatpush1.msra.mxu0 0.0
        %537 = vmatprep.subr.mxu0 0.0
        %538 = vmatpush1.msra.mxu0 0.0
        %539 = vmatprep.subr.mxu0 0.0
        %540 = vmatpush1.msra.mxu0 0.0
        %541 = vmatprep.subr.mxu0 0.0
        %542 = vmatpush1.msra.mxu0 0.0
        %543 = vmatprep.subr.mxu0 0.0
        %544 = vmatpush1.msra.mxu0 0.0
        %545 = vmatprep.subr.mxu0 0.0
        %546 = vmatpush1.msra.mxu0 0.0
        %547 = vmatprep.subr.mxu0 0.0
        %548 = vmatpush1.msra.mxu0 0.0
        %549 = vmatprep.subr.mxu0 0.0
        %550 = vmatpush1.msra.mxu0 0.0
        %551 = vmatprep.subr.mxu0 0.0
        %552 = vmatpush1.msra.mxu0 0.0
        %553 = vmatprep.subr.mxu0 0.0
        %554 = vmatpush1.msra.mxu0 0.0
        %555 = vmatprep.subr.mxu0 0.0
        %556 = vmatpush1.msra.mxu0 0.0
        %557 = vmatprep.subr.mxu0 0.0
        %558 = vmatpush1.msra.mxu0 0.0
        %559 = vmatprep.subr.mxu0 0.0
        %560 = vmatpush1.msra.mxu0 0.0
        %561 = vmatprep.subr.mxu0 0.0
        %562 = vmatpush1.msra.mxu0 0.0
        %563 = vmatprep.mubr.f32.mxu0 0.0
        %564 = vmatmul.mubr.f32.gmra.mrb[0].mxu0 %v493
        %v565 = vpop.f32.mrb[0].mxu0
        %v566 = vadd.f32 0.0, %v565
        %v567 = vpop.f32.mrb[0].mxu0
        %568 = vdwg.mxu0
        %v570 = vrot.slane %v566, 1
        %v572 = vadd.f32 %v566, %v570
        %v573 = vxor.u32 %v572, 2147483648
        %v574 = vmul.f32 %v573, 1.442695
        %v575 = vpow.pop %v574
        %v576 = vadd.f32 %v575, 1.0
        %v577 = vrcp.pop %v576
        %v578 = vmul.f32 1.0, %v577
        %v579 = vlaneseq
        %v580 = vshrl.u32 %v579, 7
        %v581 = vsub.s32 0, %v580
        %v582 = vrot.slane %v578, %v581
        %584 = vbcast.lane.b32.xlu0 %v582, 256
        %v585 = vpop.permute.xlu0 %584
        %s587 = sor.u32 256, 8
        %588 = vbcast.lane.b32.xlu0 %v582, %s587
        %v589 = vpop.permute.xlu0 %588
        %v590 = vmul.f32 %v365, %v585
        %v591 = vmul.f32 %v366, %v585
        %v592 = vmul.f32 %v367, %v589
        %v593 = vmul.f32 %v368, %v589
        %v594 = vadd.f32 %v590, %v592
        %v595 = vrot.slane %v594, 4
        %v596 = vadd.f32 %v594, %v595
        %v597 = vrot.slane %v596, 2
        %v598 = vadd.f32 %v596, %v597
        %v599 = vrot.slane %v598, 1
        %v600 = vadd.f32 %v598, %v599
        %v601 = vadd.f32 %v591, %v593
        %v602 = vrot.slane %v601, 4
        %v603 = vadd.f32 %v601, %v602
        %v604 = vrot.slane %v603, 2
        %v605 = vadd.f32 %v603, %v604
        %v606 = vrot.slane %v605, 1
        %v607 = vadd.f32 %v605, %v606
        %v608 = vrcp.pop 16.0
        %v609 = vmul.f32 %v600, %v608
        %v610 = vmul.f32 %v607, %v608
        %v611 = vmax.f32 %v590, %v592
        %v612 = vrot.slane %v611, 4
        %v613 = vmax.f32 %v611, %v612
        %v614 = vrot.slane %v613, 2
        %v615 = vmax.f32 %v613, %v614
        %v616 = vrot.slane %v615, 1
        %v617 = vmax.f32 %v615, %v616
        %v618 = vmax.f32 %v591, %v593
        %v619 = vrot.slane %v618, 4
        %v620 = vmax.f32 %v618, %v619
        %v621 = vrot.slane %v620, 2
        %v622 = vmax.f32 %v620, %v621
        %v623 = vrot.slane %v622, 1
        %v624 = vmax.f32 %v622, %v623
        %v625 = vld [vmem:[%s4] sm:$0x7f]
        %v626 = vld [vmem:[%s4 + $0x8] sm:$0x7f]
        %vm627 = vcmp.gt.f32.partialorder %v625, 0.5
        %vm628 = vcmp.gt.f32.partialorder %v626, 0.5
        %v629 = vld [vmem:[%s5] sm:$0x7f]
        %v630 = vld [vmem:[%s5 + $0x8] sm:$0x7f]
        %vm631 = vcmp.gt.f32.partialorder %v629, 0.5
        %vm632 = vcmp.gt.f32.partialorder %v630, 0.5
        %633 = vrot.lane.b32.xlu0 %v609, 3
        %v634 = vpop.permute.xlu0 %633
        %635 = vrot.lane.b32.xlu0 %v610, 3
        %v636 = vpop.permute.xlu0 %635
        %vm637 = vcmp.lt.s32.totalorder %v386, 3
        %v638 = vsel %vm637, %v634, %v636
        %v639 = vsel %vm637, %v636, %v634
        %640 = vrot.lane.b32.xlu0 %v617, 3
        %v641 = vpop.permute.xlu0 %640
        %642 = vrot.lane.b32.xlu0 %v624, 3
        %v643 = vpop.permute.xlu0 %642
        %v644 = vsel %vm637, %v641, %v643
        %v645 = vsel %vm637, %v643, %v641
        %v646 = vsel %vm627, %v639, 0.0
        %v647 = vsel %vm628, %v638, 0.0
        %v648 = vsel %vm627, %v645, 0.0
        %v649 = vsel %vm628, %v644, 0.0
        %650 = vrot.lane.b32.xlu0 %v609, 2
        %v651 = vpop.permute.xlu0 %650
        %652 = vrot.lane.b32.xlu0 %v610, 2
        %v653 = vpop.permute.xlu0 %652
        %vm654 = vcmp.lt.s32.totalorder %v386, 2
        %v655 = vsel %vm654, %v651, %v653
        %v656 = vsel %vm654, %v653, %v651
        %657 = vrot.lane.b32.xlu0 %v617, 2
        %v658 = vpop.permute.xlu0 %657
        %659 = vrot.lane.b32.xlu0 %v624, 2
        %v660 = vpop.permute.xlu0 %659
        %v661 = vsel %vm654, %v658, %v660
        %v662 = vsel %vm654, %v660, %v658
        %v665 = vrot.slane %v656, 7
        %v666 = vrot.slane %v655, 7
        %v669 = vsel %vm627, %v665, 0.0
        %v670 = vsel %vm628, %v666, 0.0
        %v673 = vrot.slane %v662, 7
        %v674 = vrot.slane %v661, 7
        %v677 = vsel %vm627, %v673, 0.0
        %v678 = vsel %vm628, %v674, 0.0
        %679 = vrot.lane.b32.xlu0 %v609, 1
        %v680 = vpop.permute.xlu0 %679
        %681 = vrot.lane.b32.xlu0 %v610, 1
        %v682 = vpop.permute.xlu0 %681
        %vm683 = vcmp.lt.s32.totalorder %v386, 1
        %v684 = vsel %vm683, %v680, %v682
        %v685 = vsel %vm683, %v682, %v680
        %686 = vrot.lane.b32.xlu0 %v617, 1
        %v687 = vpop.permute.xlu0 %686
        %688 = vrot.lane.b32.xlu0 %v624, 1
        %v689 = vpop.permute.xlu0 %688
        %v690 = vsel %vm683, %v687, %v689
        %v691 = vsel %vm683, %v689, %v687
        %v694 = vrot.slane %v685, 6
        %v695 = vrot.slane %v684, 6
        %v698 = vsel %vm627, %v694, 0.0
        %v699 = vsel %vm628, %v695, 0.0
        %v702 = vrot.slane %v691, 6
        %v703 = vrot.slane %v690, 6
        %v706 = vsel %vm627, %v702, 0.0
        %v707 = vsel %vm628, %v703, 0.0
        %708 = vrot.lane.b32.xlu0 %v609, 127
        %v709 = vpop.permute.xlu0 %708
        %710 = vrot.lane.b32.xlu0 %v610, 127
        %v711 = vpop.permute.xlu0 %710
        %vm712 = vcmp.lt.s32.totalorder %v386, 127
        %v713 = vsel %vm712, %v709, %v711
        %v714 = vsel %vm712, %v711, %v709
        %715 = vrot.lane.b32.xlu0 %v617, 127
        %v716 = vpop.permute.xlu0 %715
        %717 = vrot.lane.b32.xlu0 %v624, 127
        %v718 = vpop.permute.xlu0 %717
        %v719 = vsel %vm712, %v716, %v718
        %v720 = vsel %vm712, %v718, %v716
        %v723 = vrot.slane %v713, 4
        %v724 = vrot.slane %v714, 4
        %v727 = vsel %vm627, %v723, 0.0
        %v728 = vsel %vm628, %v724, 0.0
        %v731 = vrot.slane %v719, 4
        %v732 = vrot.slane %v720, 4
        %v735 = vsel %vm627, %v731, 0.0
        %v736 = vsel %vm628, %v732, 0.0
        %737 = vrot.lane.b32.xlu0 %v609, 126
        %v738 = vpop.permute.xlu0 %737
        %739 = vrot.lane.b32.xlu0 %v610, 126
        %v740 = vpop.permute.xlu0 %739
        %vm741 = vcmp.lt.s32.totalorder %v386, 126
        %v742 = vsel %vm741, %v738, %v740
        %v743 = vsel %vm741, %v740, %v738
        %744 = vrot.lane.b32.xlu0 %v617, 126
        %v745 = vpop.permute.xlu0 %744
        %746 = vrot.lane.b32.xlu0 %v624, 126
        %v747 = vpop.permute.xlu0 %746
        %v748 = vsel %vm741, %v745, %v747
        %v749 = vsel %vm741, %v747, %v745
        %v752 = vrot.slane %v742, 3
        %v753 = vrot.slane %v743, 3
        %v756 = vsel %vm627, %v752, 0.0
        %v757 = vsel %vm628, %v753, 0.0
        %v760 = vrot.slane %v748, 3
        %v761 = vrot.slane %v749, 3
        %v764 = vsel %vm627, %v760, 0.0
        %v765 = vsel %vm628, %v761, 0.0
        %766 = vrot.lane.b32.xlu0 %v609, 125
        %v767 = vpop.permute.xlu0 %766
        %768 = vrot.lane.b32.xlu0 %v610, 125
        %v769 = vpop.permute.xlu0 %768
        %vm770 = vcmp.lt.s32.totalorder %v386, 125
        %v771 = vsel %vm770, %v767, %v769
        %v772 = vsel %vm770, %v769, %v767
        %773 = vrot.lane.b32.xlu0 %v617, 125
        %v774 = vpop.permute.xlu0 %773
        %775 = vrot.lane.b32.xlu0 %v624, 125
        %v776 = vpop.permute.xlu0 %775
        %v777 = vsel %vm770, %v774, %v776
        %v778 = vsel %vm770, %v776, %v774
        %v781 = vrot.slane %v771, 2
        %v782 = vrot.slane %v772, 2
        %v785 = vsel %vm627, %v781, 0.0
        %v786 = vsel %vm628, %v782, 0.0
        %v789 = vrot.slane %v777, 2
        %v790 = vrot.slane %v778, 2
        %v793 = vsel %vm627, %v789, 0.0
        %v794 = vsel %vm628, %v790, 0.0
        %s795 = sld [smem:[#allocation6]]
        %s796 = sld [smem:[#allocation6 + $0x1]]
        %s797 = sld [smem:[#allocation6 + $0x2]]
        %s798 = sld [smem:[#allocation6 + $0x3]]
        %s799 = sld [smem:[#allocation6 + $0x4]]
        %s800 = sld [smem:[#allocation6 + $0x5]]
        %s801 = sld [smem:[#allocation6 + $0x6]]
        %s802 = sld [smem:[#allocation6 + $0x7]]
        %s803 = sld [smem:[#allocation6 + $0x8]]
        %s804 = sld [smem:[#allocation6 + $0x9]]
        %s805 = sld [smem:[#allocation6 + $0xa]]
        %s806 = sld [smem:[#allocation6 + $0xb]]
        %s807 = sld [smem:[#allocation6 + $0xc]]
        %s808 = sld [smem:[#allocation6 + $0xd]]
        %s809 = sld [smem:[#allocation6 + $0xe]]
        %s810 = sld [smem:[#allocation6 + $0xf]]
        %s811 = sld [smem:[#allocation6 + $0x10]]
        %s812 = sld [smem:[#allocation6 + $0x11]]
        %s813 = sld [smem:[#allocation6 + $0x12]]
        %s814 = sld [smem:[#allocation6 + $0x13]]
        %s815 = sld [smem:[#allocation6 + $0x14]]
        %s816 = sld [smem:[#allocation6 + $0x15]]
        %s817 = sld [smem:[#allocation6 + $0x16]]
        %s818 = sld [smem:[#allocation6 + $0x17]]
        %s819 = sld [smem:[#allocation6 + $0x18]]
        %s820 = sld [smem:[#allocation6 + $0x19]]
        %s821 = sld [smem:[#allocation6 + $0x1a]]
        %s822 = sld [smem:[#allocation6 + $0x1b]]
        %s823 = sld [smem:[#allocation6 + $0x1c]]
        %s824 = sld [smem:[#allocation6 + $0x1d]]
        %s825 = sld [smem:[#allocation6 + $0x1e]]
        %s826 = sld [smem:[#allocation6 + $0x1f]]
        %s827 = sld [smem:[#allocation6 + $0x20]]
        %s828 = sld [smem:[#allocation6 + $0x21]]
        %s829 = sld [smem:[#allocation6 + $0x22]]
        %s830 = sld [smem:[#allocation6 + $0x23]]
        %s831 = sld [smem:[#allocation6 + $0x24]]
        %s832 = sld [smem:[#allocation6 + $0x25]]
        %s833 = sld [smem:[#allocation6 + $0x26]]
        %s834 = sld [smem:[#allocation6 + $0x27]]
        %s835 = sld [smem:[#allocation6 + $0x28]]
        %s836 = sld [smem:[#allocation6 + $0x29]]
        %s837 = sld [smem:[#allocation6 + $0x2a]]
        %s838 = sld [smem:[#allocation6 + $0x2b]]
        %s839 = sld [smem:[#allocation6 + $0x2c]]
        %s840 = sld [smem:[#allocation6 + $0x2d]]
        %s841 = sld [smem:[#allocation6 + $0x2e]]
        %s842 = sld [smem:[#allocation6 + $0x2f]]
        %s843 = sld [smem:[#allocation6 + $0x30]]
        %s844 = sld [smem:[#allocation6 + $0x31]]
        %s845 = sld [smem:[#allocation6 + $0x32]]
        %s846 = sld [smem:[#allocation6 + $0x33]]
        %s847 = sld [smem:[#allocation6 + $0x34]]
        %s848 = sld [smem:[#allocation6 + $0x35]]
        %s849 = sld [smem:[#allocation6 + $0x36]]
        %s850 = sld [smem:[#allocation6 + $0x37]]
        %s851 = sld [smem:[#allocation6 + $0x38]]
        %s852 = sld [smem:[#allocation6 + $0x39]]
        %s853 = sld [smem:[#allocation6 + $0x3a]]
        %s854 = sld [smem:[#allocation6 + $0x3b]]
        %s855 = sld [smem:[#allocation6 + $0x3c]]
        %s856 = sld [smem:[#allocation6 + $0x3d]]
        %s857 = sld [smem:[#allocation6 + $0x3e]]
        %s858 = sld [smem:[#allocation6 + $0x3f]]
        %s859 = sld [smem:[#allocation6 + $0x40]]
        %s860 = sld [smem:[#allocation6 + $0x41]]
        %s861 = sld [smem:[#allocation6 + $0x42]]
        %s862 = sld [smem:[#allocation6 + $0x43]]
        %s863 = sld [smem:[#allocation6 + $0x44]]
        %s864 = sld [smem:[#allocation6 + $0x45]]
        %s865 = sld [smem:[#allocation6 + $0x46]]
        %s866 = sld [smem:[#allocation6 + $0x47]]
        %s867 = sld [smem:[#allocation6 + $0x48]]
        %s868 = sld [smem:[#allocation6 + $0x49]]
        %s869 = sld [smem:[#allocation6 + $0x4a]]
        %s870 = sld [smem:[#allocation6 + $0x4b]]
        %s871 = sld [smem:[#allocation6 + $0x4c]]
        %s872 = sld [smem:[#allocation6 + $0x4d]]
        %s873 = sld [smem:[#allocation6 + $0x4e]]
        %s874 = sld [smem:[#allocation6 + $0x4f]]
        %s875 = sld [smem:[#allocation6 + $0x50]]
        %s876 = sld [smem:[#allocation6 + $0x51]]
        %s877 = sld [smem:[#allocation6 + $0x52]]
        %s878 = sld [smem:[#allocation6 + $0x53]]
        %s879 = sld [smem:[#allocation6 + $0x54]]
        %s880 = sld [smem:[#allocation6 + $0x55]]
        %s881 = sld [smem:[#allocation6 + $0x56]]
        %s882 = sld [smem:[#allocation6 + $0x57]]
        %s883 = sld [smem:[#allocation6 + $0x58]]
        %s884 = sld [smem:[#allocation6 + $0x59]]
        %s885 = sld [smem:[#allocation6 + $0x5a]]
        %s886 = sld [smem:[#allocation6 + $0x5b]]
        %s887 = sld [smem:[#allocation6 + $0x5c]]
        %s888 = sld [smem:[#allocation6 + $0x5d]]
        %s889 = sld [smem:[#allocation6 + $0x5e]]
        %s890 = sld [smem:[#allocation6 + $0x5f]]
        %s891 = sld [smem:[#allocation6 + $0x60]]
        %s892 = sld [smem:[#allocation6 + $0x61]]
        %v893 = vstv %s795
        %v894 = vmul.f32 %v893, %v646
        %v895 = vmul.f32 %v893, %v647
        %v896 = vstv %s844
        %v897 = vmul.f32 %v896, %v648
        %v898 = vmul.f32 %v896, %v649
        %v899 = vadd.f32 %v894, %v897
        %v900 = vadd.f32 %v895, %v898
        %v901 = vstv %s796
        %v902 = vmul.f32 %v901, %v669
        %v903 = vmul.f32 %v901, %v670
        %v904 = vstv %s845
        %v905 = vmul.f32 %v904, %v677
        %v906 = vmul.f32 %v904, %v678
        %v907 = vadd.f32 %v902, %v905
        %v908 = vadd.f32 %v903, %v906
        %v911 = vrot.slane %v907, 1
        %v912 = vrot.slane %v908, 1
        %v915 = vadd.f32 %v899, %v911
        %v916 = vadd.f32 %v900, %v912
        %v917 = vstv %s797
        %v918 = vmul.f32 %v917, %v698
        %v919 = vmul.f32 %v917, %v699
        %v920 = vstv %s846
        %v921 = vmul.f32 %v920, %v706
        %v922 = vmul.f32 %v920, %v707
        %v923 = vadd.f32 %v918, %v921
        %v924 = vadd.f32 %v919, %v922
        %v927 = vrot.slane %v923, 2
        %v928 = vrot.slane %v924, 2
        %v931 = vadd.f32 %v915, %v927
        %v932 = vadd.f32 %v916, %v928
        %v933 = vstv %s798
        %v934 = vmul.f32 %v933, %v609
        %v935 = vmul.f32 %v933, %v610
        %v936 = vstv %s847
        %v937 = vmul.f32 %v936, %v617
        %v938 = vmul.f32 %v936, %v624
        %v939 = vadd.f32 %v934, %v937
        %v940 = vadd.f32 %v935, %v938
        %v941 = vadd.f32 %v931, %v939
        %v942 = vadd.f32 %v932, %v940
        %v943 = vstv %s799
        %v944 = vmul.f32 %v943, %v727
        %v945 = vmul.f32 %v943, %v728
        %v946 = vstv %s848
        %v947 = vmul.f32 %v946, %v735
        %v948 = vmul.f32 %v946, %v736
        %v949 = vadd.f32 %v944, %v947
        %v950 = vadd.f32 %v945, %v948
        %v953 = vrot.slane %v949, 4
        %v954 = vrot.slane %v950, 4
        %v957 = vadd.f32 %v941, %v953
        %v958 = vadd.f32 %v942, %v954
        %v959 = vstv %s800
        %v960 = vmul.f32 %v959, %v756
        %v961 = vmul.f32 %v959, %v757
        %v962 = vstv %s849
        %v963 = vmul.f32 %v962, %v764
        %v964 = vmul.f32 %v962, %v765
        %v965 = vadd.f32 %v960, %v963
        %v966 = vadd.f32 %v961, %v964
        %v969 = vrot.slane %v965, 5
        %v970 = vrot.slane %v966, 5
        %v973 = vadd.f32 %v957, %v969
        %v974 = vadd.f32 %v958, %v970
        %v975 = vstv %s801
        %v976 = vmul.f32 %v975, %v785
        %v977 = vmul.f32 %v975, %v786
        %v978 = vstv %s850
        %v979 = vmul.f32 %v978, %v793
        %v980 = vmul.f32 %v978, %v794
        %v981 = vadd.f32 %v976, %v979
        %v982 = vadd.f32 %v977, %v980
        %v985 = vrot.slane %v981, 6
        %v986 = vrot.slane %v982, 6
        %v989 = vadd.f32 %v973, %v985
        %v990 = vadd.f32 %v974, %v986
        %991 = vrot.lane.b32.xlu0 %v989, 48
        %v992 = vpop.permute.xlu0 %991
        %993 = vrot.lane.b32.xlu0 %v990, 48
        %v994 = vpop.permute.xlu0 %993
        %vm995 = vcmp.lt.s32.totalorder %v386, 48
        %v996 = vsel %vm995, %v992, %v994
        %v997 = vsel %vm995, %v994, %v992
        %v998 = vsel %vm631, %v997, 0.0
        %v999 = vsel %vm632, %v996, 0.0
        %v1000 = vstv %s802
        %v1001 = vmul.f32 %v1000, %v646
        %v1002 = vmul.f32 %v1000, %v647
        %v1003 = vstv %s851
        %v1004 = vmul.f32 %v1003, %v648
        %v1005 = vmul.f32 %v1003, %v649
        %v1006 = vadd.f32 %v1001, %v1004
        %v1007 = vadd.f32 %v1002, %v1005
        %v1008 = vstv %s803
        %v1009 = vmul.f32 %v1008, %v669
        %v1010 = vmul.f32 %v1008, %v670
        %v1011 = vstv %s852
        %v1012 = vmul.f32 %v1011, %v677
        %v1013 = vmul.f32 %v1011, %v678
        %v1014 = vadd.f32 %v1009, %v1012
        %v1015 = vadd.f32 %v1010, %v1013
        %v1018 = vrot.slane %v1014, 1
        %v1019 = vrot.slane %v1015, 1
        %v1022 = vadd.f32 %v1006, %v1018
        %v1023 = vadd.f32 %v1007, %v1019
        %v1024 = vstv %s804
        %v1025 = vmul.f32 %v1024, %v698
        %v1026 = vmul.f32 %v1024, %v699
        %v1027 = vstv %s853
        %v1028 = vmul.f32 %v1027, %v706
        %v1029 = vmul.f32 %v1027, %v707
        %v1030 = vadd.f32 %v1025, %v1028
        %v1031 = vadd.f32 %v1026, %v1029
        %v1034 = vrot.slane %v1030, 2
        %v1035 = vrot.slane %v1031, 2
        %v1038 = vadd.f32 %v1022, %v1034
        %v1039 = vadd.f32 %v1023, %v1035
        %v1040 = vstv %s805
        %v1041 = vmul.f32 %v1040, %v609
        %v1042 = vmul.f32 %v1040, %v610
        %v1043 = vstv %s854
        %v1044 = vmul.f32 %v1043, %v617
        %v1045 = vmul.f32 %v1043, %v624
        %v1046 = vadd.f32 %v1041, %v1044
        %v1047 = vadd.f32 %v1042, %v1045
        %v1048 = vadd.f32 %v1038, %v1046
        %v1049 = vadd.f32 %v1039, %v1047
        %v1050 = vstv %s806
        %v1051 = vmul.f32 %v1050, %v727
        %v1052 = vmul.f32 %v1050, %v728
        %v1053 = vstv %s855
        %v1054 = vmul.f32 %v1053, %v735
        %v1055 = vmul.f32 %v1053, %v736
        %v1056 = vadd.f32 %v1051, %v1054
        %v1057 = vadd.f32 %v1052, %v1055
        %v1060 = vrot.slane %v1056, 4
        %v1061 = vrot.slane %v1057, 4
        %v1064 = vadd.f32 %v1048, %v1060
        %v1065 = vadd.f32 %v1049, %v1061
        %v1066 = vstv %s807
        %v1067 = vmul.f32 %v1066, %v756
        %v1068 = vmul.f32 %v1066, %v757
        %v1069 = vstv %s856
        %v1070 = vmul.f32 %v1069, %v764
        %v1071 = vmul.f32 %v1069, %v765
        %v1072 = vadd.f32 %v1067, %v1070
        %v1073 = vadd.f32 %v1068, %v1071
        %v1076 = vrot.slane %v1072, 5
        %v1077 = vrot.slane %v1073, 5
        %v1080 = vadd.f32 %v1064, %v1076
        %v1081 = vadd.f32 %v1065, %v1077
        %v1082 = vstv %s808
        %v1083 = vmul.f32 %v1082, %v785
        %v1084 = vmul.f32 %v1082, %v786
        %v1085 = vstv %s857
        %v1086 = vmul.f32 %v1085, %v793
        %v1087 = vmul.f32 %v1085, %v794
        %v1088 = vadd.f32 %v1083, %v1086
        %v1089 = vadd.f32 %v1084, %v1087
        %v1092 = vrot.slane %v1088, 6
        %v1093 = vrot.slane %v1089, 6
        %v1096 = vadd.f32 %v1080, %v1092
        %v1097 = vadd.f32 %v1081, %v1093
        %1098 = vrot.lane.b32.xlu0 %v1096, 32
        %v1099 = vpop.permute.xlu0 %1098
        %1100 = vrot.lane.b32.xlu0 %v1097, 32
        %v1101 = vpop.permute.xlu0 %1100
        %vm1102 = vcmp.lt.s32.totalorder %v386, 32
        %v1103 = vsel %vm1102, %v1099, %v1101
        %v1104 = vsel %vm1102, %v1101, %v1099
        %v1107 = vrot.slane %v1104, 7
        %v1108 = vrot.slane %v1103, 7
        %v1111 = vsel %vm631, %v1107, 0.0
        %v1112 = vsel %vm632, %v1108, 0.0
        %v1115 = vrot.slane %v1111, 1
        %v1116 = vrot.slane %v1112, 1
        %v1119 = vadd.f32 %v998, %v1115
        %v1120 = vadd.f32 %v999, %v1116
        %v1121 = vstv %s809
        %v1122 = vmul.f32 %v1121, %v646
        %v1123 = vmul.f32 %v1121, %v647
        %v1124 = vstv %s858
        %v1125 = vmul.f32 %v1124, %v648
        %v1126 = vmul.f32 %v1124, %v649
        %v1127 = vadd.f32 %v1122, %v1125
        %v1128 = vadd.f32 %v1123, %v1126
        %v1129 = vstv %s810
        %v1130 = vmul.f32 %v1129, %v669
        %v1131 = vmul.f32 %v1129, %v670
        %v1132 = vstv %s859
        %v1133 = vmul.f32 %v1132, %v677
        %v1134 = vmul.f32 %v1132, %v678
        %v1135 = vadd.f32 %v1130, %v1133
        %v1136 = vadd.f32 %v1131, %v1134
        %v1139 = vrot.slane %v1135, 1
        %v1140 = vrot.slane %v1136, 1
        %v1143 = vadd.f32 %v1127, %v1139
        %v1144 = vadd.f32 %v1128, %v1140
        %v1145 = vstv %s811
        %v1146 = vmul.f32 %v1145, %v698
        %v1147 = vmul.f32 %v1145, %v699
        %v1148 = vstv %s860
        %v1149 = vmul.f32 %v1148, %v706
        %v1150 = vmul.f32 %v1148, %v707
        %v1151 = vadd.f32 %v1146, %v1149
        %v1152 = vadd.f32 %v1147, %v1150
        %v1155 = vrot.slane %v1151, 2
        %v1156 = vrot.slane %v1152, 2
        %v1159 = vadd.f32 %v1143, %v1155
        %v1160 = vadd.f32 %v1144, %v1156
        %v1161 = vstv %s812
        %v1162 = vmul.f32 %v1161, %v609
        %v1163 = vmul.f32 %v1161, %v610
        %v1164 = vstv %s861
        %v1165 = vmul.f32 %v1164, %v617
        %v1166 = vmul.f32 %v1164, %v624
        %v1167 = vadd.f32 %v1162, %v1165
        %v1168 = vadd.f32 %v1163, %v1166
        %v1169 = vadd.f32 %v1159, %v1167
        %v1170 = vadd.f32 %v1160, %v1168
        %v1171 = vstv %s813
        %v1172 = vmul.f32 %v1171, %v727
        %v1173 = vmul.f32 %v1171, %v728
        %v1174 = vstv %s862
        %v1175 = vmul.f32 %v1174, %v735
        %v1176 = vmul.f32 %v1174, %v736
        %v1177 = vadd.f32 %v1172, %v1175
        %v1178 = vadd.f32 %v1173, %v1176
        %v1181 = vrot.slane %v1177, 4
        %v1182 = vrot.slane %v1178, 4
        %v1185 = vadd.f32 %v1169, %v1181
        %v1186 = vadd.f32 %v1170, %v1182
        %v1187 = vstv %s814
        %v1188 = vmul.f32 %v1187, %v756
        %v1189 = vmul.f32 %v1187, %v757
        %v1190 = vstv %s863
        %v1191 = vmul.f32 %v1190, %v764
        %v1192 = vmul.f32 %v1190, %v765
        %v1193 = vadd.f32 %v1188, %v1191
        %v1194 = vadd.f32 %v1189, %v1192
        %v1197 = vrot.slane %v1193, 5
        %v1198 = vrot.slane %v1194, 5
        %v1201 = vadd.f32 %v1185, %v1197
        %v1202 = vadd.f32 %v1186, %v1198
        %v1203 = vstv %s815
        %v1204 = vmul.f32 %v1203, %v785
        %v1205 = vmul.f32 %v1203, %v786
        %v1206 = vstv %s864
        %v1207 = vmul.f32 %v1206, %v793
        %v1208 = vmul.f32 %v1206, %v794
        %v1209 = vadd.f32 %v1204, %v1207
        %v1210 = vadd.f32 %v1205, %v1208
        %v1213 = vrot.slane %v1209, 6
        %v1214 = vrot.slane %v1210, 6
        %v1217 = vadd.f32 %v1201, %v1213
        %v1218 = vadd.f32 %v1202, %v1214
        %1219 = vrot.lane.b32.xlu0 %v1217, 16
        %v1220 = vpop.permute.xlu0 %1219
        %1221 = vrot.lane.b32.xlu0 %v1218, 16
        %v1222 = vpop.permute.xlu0 %1221
        %vm1223 = vcmp.lt.s32.totalorder %v386, 16
        %v1224 = vsel %vm1223, %v1220, %v1222
        %v1225 = vsel %vm1223, %v1222, %v1220
        %v1228 = vrot.slane %v1225, 6
        %v1229 = vrot.slane %v1224, 6
        %v1232 = vsel %vm631, %v1228, 0.0
        %v1233 = vsel %vm632, %v1229, 0.0
        %v1236 = vrot.slane %v1232, 2
        %v1237 = vrot.slane %v1233, 2
        %v1240 = vadd.f32 %v1119, %v1236
        %v1241 = vadd.f32 %v1120, %v1237
        %v1242 = vstv %s816
        %v1243 = vmul.f32 %v1242, %v646
        %v1244 = vmul.f32 %v1242, %v647
        %v1245 = vstv %s865
        %v1246 = vmul.f32 %v1245, %v648
        %v1247 = vmul.f32 %v1245, %v649
        %v1248 = vadd.f32 %v1243, %v1246
        %v1249 = vadd.f32 %v1244, %v1247
        %v1250 = vstv %s817
        %v1251 = vmul.f32 %v1250, %v669
        %v1252 = vmul.f32 %v1250, %v670
        %v1253 = vstv %s866
        %v1254 = vmul.f32 %v1253, %v677
        %v1255 = vmul.f32 %v1253, %v678
        %v1256 = vadd.f32 %v1251, %v1254
        %v1257 = vadd.f32 %v1252, %v1255
        %v1260 = vrot.slane %v1256, 1
        %v1261 = vrot.slane %v1257, 1
        %v1264 = vadd.f32 %v1248, %v1260
        %v1265 = vadd.f32 %v1249, %v1261
        %v1266 = vstv %s818
        %v1267 = vmul.f32 %v1266, %v698
        %v1268 = vmul.f32 %v1266, %v699
        %v1269 = vstv %s867
        %v1270 = vmul.f32 %v1269, %v706
        %v1271 = vmul.f32 %v1269, %v707
        %v1272 = vadd.f32 %v1267, %v1270
        %v1273 = vadd.f32 %v1268, %v1271
        %v1276 = vrot.slane %v1272, 2
        %v1277 = vrot.slane %v1273, 2
        %v1280 = vadd.f32 %v1264, %v1276
        %v1281 = vadd.f32 %v1265, %v1277
        %v1282 = vstv %s819
        %v1283 = vmul.f32 %v1282, %v609
        %v1284 = vmul.f32 %v1282, %v610
        %v1285 = vstv %s868
        %v1286 = vmul.f32 %v1285, %v617
        %v1287 = vmul.f32 %v1285, %v624
        %v1288 = vadd.f32 %v1283, %v1286
        %v1289 = vadd.f32 %v1284, %v1287
        %v1290 = vadd.f32 %v1280, %v1288
        %v1291 = vadd.f32 %v1281, %v1289
        %v1292 = vstv %s820
        %v1293 = vmul.f32 %v1292, %v727
        %v1294 = vmul.f32 %v1292, %v728
        %v1295 = vstv %s869
        %v1296 = vmul.f32 %v1295, %v735
        %v1297 = vmul.f32 %v1295, %v736
        %v1298 = vadd.f32 %v1293, %v1296
        %v1299 = vadd.f32 %v1294, %v1297
        %v1302 = vrot.slane %v1298, 4
        %v1303 = vrot.slane %v1299, 4
        %v1306 = vadd.f32 %v1290, %v1302
        %v1307 = vadd.f32 %v1291, %v1303
        %v1308 = vstv %s821
        %v1309 = vmul.f32 %v1308, %v756
        %v1310 = vmul.f32 %v1308, %v757
        %v1311 = vstv %s870
        %v1312 = vmul.f32 %v1311, %v764
        %v1313 = vmul.f32 %v1311, %v765
        %v1314 = vadd.f32 %v1309, %v1312
        %v1315 = vadd.f32 %v1310, %v1313
        %v1318 = vrot.slane %v1314, 5
        %v1319 = vrot.slane %v1315, 5
        %v1322 = vadd.f32 %v1306, %v1318
        %v1323 = vadd.f32 %v1307, %v1319
        %v1324 = vstv %s822
        %v1325 = vmul.f32 %v1324, %v785
        %v1326 = vmul.f32 %v1324, %v786
        %v1327 = vstv %s871
        %v1328 = vmul.f32 %v1327, %v793
        %v1329 = vmul.f32 %v1327, %v794
        %v1330 = vadd.f32 %v1325, %v1328
        %v1331 = vadd.f32 %v1326, %v1329
        %v1334 = vrot.slane %v1330, 6
        %v1335 = vrot.slane %v1331, 6
        %v1338 = vadd.f32 %v1322, %v1334
        %v1339 = vadd.f32 %v1323, %v1335
        %v1340 = vadd.f32 %v1240, %v1338
        %v1341 = vadd.f32 %v1241, %v1339
        %v1342 = vstv %s823
        %v1343 = vmul.f32 %v1342, %v646
        %v1344 = vmul.f32 %v1342, %v647
        %v1345 = vstv %s872
        %v1346 = vmul.f32 %v1345, %v648
        %v1347 = vmul.f32 %v1345, %v649
        %v1348 = vadd.f32 %v1343, %v1346
        %v1349 = vadd.f32 %v1344, %v1347
        %v1350 = vstv %s824
        %v1351 = vmul.f32 %v1350, %v669
        %v1352 = vmul.f32 %v1350, %v670
        %v1353 = vstv %s873
        %v1354 = vmul.f32 %v1353, %v677
        %v1355 = vmul.f32 %v1353, %v678
        %v1356 = vadd.f32 %v1351, %v1354
        %v1357 = vadd.f32 %v1352, %v1355
        %v1360 = vrot.slane %v1356, 1
        %v1361 = vrot.slane %v1357, 1
        %v1364 = vadd.f32 %v1348, %v1360
        %v1365 = vadd.f32 %v1349, %v1361
        %v1366 = vstv %s825
        %v1367 = vmul.f32 %v1366, %v698
        %v1368 = vmul.f32 %v1366, %v699
        %v1369 = vstv %s874
        %v1370 = vmul.f32 %v1369, %v706
        %v1371 = vmul.f32 %v1369, %v707
        %v1372 = vadd.f32 %v1367, %v1370
        %v1373 = vadd.f32 %v1368, %v1371
        %v1376 = vrot.slane %v1372, 2
        %v1377 = vrot.slane %v1373, 2
        %v1380 = vadd.f32 %v1364, %v1376
        %v1381 = vadd.f32 %v1365, %v1377
        %v1382 = vstv %s826
        %v1383 = vmul.f32 %v1382, %v609
        %v1384 = vmul.f32 %v1382, %v610
        %v1385 = vstv %s875
        %v1386 = vmul.f32 %v1385, %v617
        %v1387 = vmul.f32 %v1385, %v624
        %v1388 = vadd.f32 %v1383, %v1386
        %v1389 = vadd.f32 %v1384, %v1387
        %v1390 = vadd.f32 %v1380, %v1388
        %v1391 = vadd.f32 %v1381, %v1389
        %v1392 = vstv %s827
        %v1393 = vmul.f32 %v1392, %v727
        %v1394 = vmul.f32 %v1392, %v728
        %v1395 = vstv %s876
        %v1396 = vmul.f32 %v1395, %v735
        %v1397 = vmul.f32 %v1395, %v736
        %v1398 = vadd.f32 %v1393, %v1396
        %v1399 = vadd.f32 %v1394, %v1397
        %v1402 = vrot.slane %v1398, 4
        %v1403 = vrot.slane %v1399, 4
        %v1406 = vadd.f32 %v1390, %v1402
        %v1407 = vadd.f32 %v1391, %v1403
        %v1408 = vstv %s828
        %v1409 = vmul.f32 %v1408, %v756
        %v1410 = vmul.f32 %v1408, %v757
        %v1411 = vstv %s877
        %v1412 = vmul.f32 %v1411, %v764
        %v1413 = vmul.f32 %v1411, %v765
        %v1414 = vadd.f32 %v1409, %v1412
        %v1415 = vadd.f32 %v1410, %v1413
        %v1418 = vrot.slane %v1414, 5
        %v1419 = vrot.slane %v1415, 5
        %v1422 = vadd.f32 %v1406, %v1418
        %v1423 = vadd.f32 %v1407, %v1419
        %v1424 = vstv %s829
        %v1425 = vmul.f32 %v1424, %v785
        %v1426 = vmul.f32 %v1424, %v786
        %v1427 = vstv %s878
        %v1428 = vmul.f32 %v1427, %v793
        %v1429 = vmul.f32 %v1427, %v794
        %v1430 = vadd.f32 %v1425, %v1428
        %v1431 = vadd.f32 %v1426, %v1429
        %v1434 = vrot.slane %v1430, 6
        %v1435 = vrot.slane %v1431, 6
        %v1438 = vadd.f32 %v1422, %v1434
        %v1439 = vadd.f32 %v1423, %v1435
        %1440 = vrot.lane.b32.xlu0 %v1438, 112
        %v1441 = vpop.permute.xlu0 %1440
        %1442 = vrot.lane.b32.xlu0 %v1439, 112
        %v1443 = vpop.permute.xlu0 %1442
        %vm1444 = vcmp.lt.s32.totalorder %v386, 112
        %v1445 = vsel %vm1444, %v1441, %v1443
        %v1446 = vsel %vm1444, %v1443, %v1441
        %v1449 = vrot.slane %v1445, 4
        %v1450 = vrot.slane %v1446, 4
        %v1453 = vsel %vm631, %v1449, 0.0
        %v1454 = vsel %vm632, %v1450, 0.0
        %v1457 = vrot.slane %v1453, 4
        %v1458 = vrot.slane %v1454, 4
        %v1461 = vadd.f32 %v1340, %v1457
        %v1462 = vadd.f32 %v1341, %v1458
        %v1463 = vstv %s830
        %v1464 = vmul.f32 %v1463, %v646
        %v1465 = vmul.f32 %v1463, %v647
        %v1466 = vstv %s879
        %v1467 = vmul.f32 %v1466, %v648
        %v1468 = vmul.f32 %v1466, %v649
        %v1469 = vadd.f32 %v1464, %v1467
        %v1470 = vadd.f32 %v1465, %v1468
        %v1471 = vstv %s831
        %v1472 = vmul.f32 %v1471, %v669
        %v1473 = vmul.f32 %v1471, %v670
        %v1474 = vstv %s880
        %v1475 = vmul.f32 %v1474, %v677
        %v1476 = vmul.f32 %v1474, %v678
        %v1477 = vadd.f32 %v1472, %v1475
        %v1478 = vadd.f32 %v1473, %v1476
        %v1481 = vrot.slane %v1477, 1
        %v1482 = vrot.slane %v1478, 1
        %v1485 = vadd.f32 %v1469, %v1481
        %v1486 = vadd.f32 %v1470, %v1482
        %v1487 = vstv %s832
        %v1488 = vmul.f32 %v1487, %v698
        %v1489 = vmul.f32 %v1487, %v699
        %v1490 = vstv %s881
        %v1491 = vmul.f32 %v1490, %v706
        %v1492 = vmul.f32 %v1490, %v707
        %v1493 = vadd.f32 %v1488, %v1491
        %v1494 = vadd.f32 %v1489, %v1492
        %v1497 = vrot.slane %v1493, 2
        %v1498 = vrot.slane %v1494, 2
        %v1501 = vadd.f32 %v1485, %v1497
        %v1502 = vadd.f32 %v1486, %v1498
        %v1503 = vstv %s833
        %v1504 = vmul.f32 %v1503, %v609
        %v1505 = vmul.f32 %v1503, %v610
        %v1506 = vstv %s882
        %v1507 = vmul.f32 %v1506, %v617
        %v1508 = vmul.f32 %v1506, %v624
        %v1509 = vadd.f32 %v1504, %v1507
        %v1510 = vadd.f32 %v1505, %v1508
        %v1511 = vadd.f32 %v1501, %v1509
        %v1512 = vadd.f32 %v1502, %v1510
        %v1513 = vstv %s834
        %v1514 = vmul.f32 %v1513, %v727
        %v1515 = vmul.f32 %v1513, %v728
        %v1516 = vstv %s883
        %v1517 = vmul.f32 %v1516, %v735
        %v1518 = vmul.f32 %v1516, %v736
        %v1519 = vadd.f32 %v1514, %v1517
        %v1520 = vadd.f32 %v1515, %v1518
        %v1523 = vrot.slane %v1519, 4
        %v1524 = vrot.slane %v1520, 4
        %v1527 = vadd.f32 %v1511, %v1523
        %v1528 = vadd.f32 %v1512, %v1524
        %v1529 = vstv %s835
        %v1530 = vmul.f32 %v1529, %v756
        %v1531 = vmul.f32 %v1529, %v757
        %v1532 = vstv %s884
        %v1533 = vmul.f32 %v1532, %v764
        %v1534 = vmul.f32 %v1532, %v765
        %v1535 = vadd.f32 %v1530, %v1533
        %v1536 = vadd.f32 %v1531, %v1534
        %v1539 = vrot.slane %v1535, 5
        %v1540 = vrot.slane %v1536, 5
        %v1543 = vadd.f32 %v1527, %v1539
        %v1544 = vadd.f32 %v1528, %v1540
        %v1545 = vstv %s836
        %v1546 = vmul.f32 %v1545, %v785
        %v1547 = vmul.f32 %v1545, %v786
        %v1548 = vstv %s885
        %v1549 = vmul.f32 %v1548, %v793
        %v1550 = vmul.f32 %v1548, %v794
        %v1551 = vadd.f32 %v1546, %v1549
        %v1552 = vadd.f32 %v1547, %v1550
        %v1555 = vrot.slane %v1551, 6
        %v1556 = vrot.slane %v1552, 6
        %v1559 = vadd.f32 %v1543, %v1555
        %v1560 = vadd.f32 %v1544, %v1556
        %1561 = vrot.lane.b32.xlu0 %v1559, 96
        %v1562 = vpop.permute.xlu0 %1561
        %1563 = vrot.lane.b32.xlu0 %v1560, 96
        %v1564 = vpop.permute.xlu0 %1563
        %vm1565 = vcmp.lt.s32.totalorder %v386, 96
        %v1566 = vsel %vm1565, %v1562, %v1564
        %v1567 = vsel %vm1565, %v1564, %v1562
        %v1570 = vrot.slane %v1566, 3
        %v1571 = vrot.slane %v1567, 3
        %v1574 = vsel %vm631, %v1570, 0.0
        %v1575 = vsel %vm632, %v1571, 0.0
        %v1578 = vrot.slane %v1574, 5
        %v1579 = vrot.slane %v1575, 5
        %v1582 = vadd.f32 %v1461, %v1578
        %v1583 = vadd.f32 %v1462, %v1579
        %v1584 = vstv %s837
        %v1585 = vmul.f32 %v1584, %v646
        %v1586 = vmul.f32 %v1584, %v647
        %v1587 = vstv %s886
        %v1588 = vmul.f32 %v1587, %v648
        %v1589 = vmul.f32 %v1587, %v649
        %v1590 = vadd.f32 %v1585, %v1588
        %v1591 = vadd.f32 %v1586, %v1589
        %v1592 = vstv %s838
        %v1593 = vmul.f32 %v1592, %v669
        %v1594 = vmul.f32 %v1592, %v670
        %v1595 = vstv %s887
        %v1596 = vmul.f32 %v1595, %v677
        %v1597 = vmul.f32 %v1595, %v678
        %v1598 = vadd.f32 %v1593, %v1596
        %v1599 = vadd.f32 %v1594, %v1597
        %v1602 = vrot.slane %v1598, 1
        %v1603 = vrot.slane %v1599, 1
        %v1606 = vadd.f32 %v1590, %v1602
        %v1607 = vadd.f32 %v1591, %v1603
        %v1608 = vstv %s839
        %v1609 = vmul.f32 %v1608, %v698
        %v1610 = vmul.f32 %v1608, %v699
        %v1611 = vstv %s888
        %v1612 = vmul.f32 %v1611, %v706
        %v1613 = vmul.f32 %v1611, %v707
        %v1614 = vadd.f32 %v1609, %v1612
        %v1615 = vadd.f32 %v1610, %v1613
        %v1618 = vrot.slane %v1614, 2
        %v1619 = vrot.slane %v1615, 2
        %v1622 = vadd.f32 %v1606, %v1618
        %v1623 = vadd.f32 %v1607, %v1619
        %v1624 = vstv %s840
        %v1625 = vmul.f32 %v1624, %v609
        %v1626 = vmul.f32 %v1624, %v610
        %v1627 = vstv %s889
        %v1628 = vmul.f32 %v1627, %v617
        %v1629 = vmul.f32 %v1627, %v624
        %v1630 = vadd.f32 %v1625, %v1628
        %v1631 = vadd.f32 %v1626, %v1629
        %v1632 = vadd.f32 %v1622, %v1630
        %v1633 = vadd.f32 %v1623, %v1631
        %v1634 = vstv %s841
        %v1635 = vmul.f32 %v1634, %v727
        %v1636 = vmul.f32 %v1634, %v728
        %v1637 = vstv %s890
        %v1638 = vmul.f32 %v1637, %v735
        %v1639 = vmul.f32 %v1637, %v736
        %v1640 = vadd.f32 %v1635, %v1638
        %v1641 = vadd.f32 %v1636, %v1639
        %v1644 = vrot.slane %v1640, 4
        %v1645 = vrot.slane %v1641, 4
        %v1648 = vadd.f32 %v1632, %v1644
        %v1649 = vadd.f32 %v1633, %v1645
        %v1650 = vstv %s842
        %v1651 = vmul.f32 %v1650, %v756
        %v1652 = vmul.f32 %v1650, %v757
        %v1653 = vstv %s891
        %v1654 = vmul.f32 %v1653, %v764
        %v1655 = vmul.f32 %v1653, %v765
        %v1656 = vadd.f32 %v1651, %v1654
        %v1657 = vadd.f32 %v1652, %v1655
        %v1660 = vrot.slane %v1656, 5
        %v1661 = vrot.slane %v1657, 5
        %v1664 = vadd.f32 %v1648, %v1660
        %v1665 = vadd.f32 %v1649, %v1661
        %v1666 = vstv %s843
        %v1667 = vmul.f32 %v1666, %v785
        %v1668 = vmul.f32 %v1666, %v786
        %v1669 = vstv %s892
        %v1670 = vmul.f32 %v1669, %v793
        %v1671 = vmul.f32 %v1669, %v794
        %v1672 = vadd.f32 %v1667, %v1670
        %v1673 = vadd.f32 %v1668, %v1671
        %v1676 = vrot.slane %v1672, 6
        %v1677 = vrot.slane %v1673, 6
        %v1680 = vadd.f32 %v1664, %v1676
        %v1681 = vadd.f32 %v1665, %v1677
        %1682 = vrot.lane.b32.xlu0 %v1680, 80
        %v1683 = vpop.permute.xlu0 %1682
        %1684 = vrot.lane.b32.xlu0 %v1681, 80
        %v1685 = vpop.permute.xlu0 %1684
        %vm1686 = vcmp.lt.s32.totalorder %v386, 80
        %v1687 = vsel %vm1686, %v1683, %v1685
        %v1688 = vsel %vm1686, %v1685, %v1683
        %v1691 = vrot.slane %v1687, 2
        %v1692 = vrot.slane %v1688, 2
        %v1695 = vsel %vm631, %v1691, 0.0
        %v1696 = vsel %vm632, %v1692, 0.0
        %v1699 = vrot.slane %v1695, 6
        %v1700 = vrot.slane %v1696, 6
        %v1703 = vadd.f32 %v1582, %v1699
        %v1704 = vadd.f32 %v1583, %v1700
        %v1705 = vxor.u32 %v1703, 2147483648
        %v1706 = vxor.u32 %v1704, 2147483648
        %v1707 = vmul.f32 %v1705, 1.442695
        %v1708 = vpow.pop %v1707
        %v1709 = vmul.f32 %v1706, 1.442695
        %v1710 = vpow.pop %v1709
        %v1711 = vadd.f32 %v1708, 1.0
        %v1712 = vadd.f32 %v1710, 1.0
        %v1713 = vrcp.pop %v1711
        %v1714 = vmul.f32 1.0, %v1713
        %v1715 = vrcp.pop %v1712
        %v1716 = vmul.f32 1.0, %v1715
        %v1717 = vlaneseq
        %v1718 = vshrl.u32 %v1717, 7
        %v1719 = vsub.s32 0, %v1718
        %v1720 = vrot.slane %v1714, %v1719
        %v1721 = vlaneseq
        %v1722 = vshrl.u32 %v1721, 7
        %v1723 = vsub.s32 0, %v1722
        %v1724 = vrot.slane %v1716, %v1723
        %v1725 = vmul.f32 %v590, %v1720
        %v1726 = vmul.f32 %v591, %v1724
        %v1727 = vmul.f32 %v592, %v1720
        %v1728 = vmul.f32 %v593, %v1724
        %v1729 = vld [vmem:[%s7] sm:$0xff]
        %v1730 = vld [vmem:[%s7 + $0x8] sm:$0xff]
        %1732 = vset.pattern.permute.xlu0 0
        %1733 = vperm.xlu0 %1732, %v1729
        %v1734 = vpop.permute.xlu0 %1733
        %1737 = vset.pattern.permute.xlu0 0
        %1738 = vperm.xlu0 %1737, %v1730
        %v1739 = vpop.permute.xlu0 %1738
        %v1741 = vmul.f32 %v1725, %v1734
        %v1742 = vmul.f32 %v1726, %v1734
        %v1743 = vmul.f32 %v1727, %v1739
        %v1744 = vmul.f32 %v1728, %v1739
        %v1745 = vld [vmem:[%s8] sm:$0xff]
        %v1746 = vld [vmem:[%s8 + $0x8] sm:$0xff]
        %1748 = vset.pattern.permute.xlu0 0
        %1749 = vperm.xlu0 %1748, %v1745
        %v1750 = vpop.permute.xlu0 %1749
        %1753 = vset.pattern.permute.xlu0 0
        %1754 = vperm.xlu0 %1753, %v1746
        %v1755 = vpop.permute.xlu0 %1754
        %v1757 = vadd.f32 %v1741, %v1750
        %v1758 = vadd.f32 %v1742, %v1750
        %v1759 = vadd.f32 %v1743, %v1755
        %v1760 = vadd.f32 %v1744, %v1755
        %v1761 = vxor.u32 %v1757, 2147483648
        %v1762 = vxor.u32 %v1758, 2147483648
        %v1763 = vxor.u32 %v1759, 2147483648
        %v1764 = vxor.u32 %v1760, 2147483648
        %v1765 = vmul.f32 %v1761, 1.442695
        %v1766 = vpow.pop %v1765
        %v1767 = vmul.f32 %v1762, 1.442695
        %v1768 = vpow.pop %v1767
        %v1769 = vmul.f32 %v1763, 1.442695
        %v1770 = vpow.pop %v1769
        %v1771 = vmul.f32 %v1764, 1.442695
        %v1772 = vpow.pop %v1771
        %v1773 = vadd.f32 %v1766, 1.0
        %v1774 = vadd.f32 %v1768, 1.0
        %v1775 = vadd.f32 %v1770, 1.0
        %v1776 = vadd.f32 %v1772, 1.0
        %v1777 = vrcp.pop %v1773
        %v1778 = vmul.f32 1.0, %v1777
        %v1779 = vrcp.pop %v1774
        %v1780 = vmul.f32 1.0, %v1779
        %v1781 = vrcp.pop %v1775
        %v1782 = vmul.f32 1.0, %v1781
        %v1783 = vrcp.pop %v1776
        %v1784 = vmul.f32 1.0, %v1783
        %v1785 = vmul.f32 %v1725, %v1778
        %v1786 = vmul.f32 %v1726, %v1780
        %v1787 = vmul.f32 %v1727, %v1782
        %v1788 = vmul.f32 %v1728, %v1784
        %1789 = vst [vmem:[%s364] sm:$0xff] %v1785
        %1790 = vst [vmem:[%s364 + $0x8] sm:$0xff] %v1786
        %1791 = vst [vmem:[%s364 + $0x10] sm:$0xff] %v1787
        %1792 = vst [vmem:[%s364 + $0x18] sm:$0xff] %v1788
        %s1793 = sand.u32 %s229, 1
        %s1794 = scalar_lea.sflag [#allocation4], %s1793
        %s1795 = sand.u32 %s229, 1
        %s1796 = smul.addr %s1795, 32
        %s1797 = scalar_lea.vmem [#allocation7], %s1796
        // Predicated region
        $region65: #{tpu_custom_call.1} parent=55 // pred_check
          %p1798 = pneg %p239
        $region66: #{tpu_custom_call.1} parent=55 // pred_check_branch
          %1800 = sbr.rel (%p1798) target = $region68
        $region67: #{tpu_custom_call.1} parent=55 // pred_region
          %s1802 = ssub.s32 512, 512
          %1803 = vsyncadd %s1794, %s1802
          %s1804 = smul.addr %s27, 4
          %s1805 = smul.addr %s1804, 128
          %s1806 = scalar_lea.hbm %s9, %s1805
          %s1807 = sshll.u32 %s1797, 4
          %s1808 = int_to_ptr.vmem [resolvable:$true] %s1807
          %1813 = dma.vmem_to_hbm [thread:$0]  %s1808, 512, %s1806, %s1794, 256, 256, 16
        $region68: #{tpu_custom_call.1} parent=55 // pred_fallthru
          _
      $region56: #{tpu_custom_call.1} parent=5 // pred_fallthru
        _
      %p1814 = scmp.le.s32.totalorder 2, %s22
      // Predicated region
      $region69: #{tpu_custom_call.1} parent=5 // pred_check
        %p1815 = pneg %p1814
      $region70: #{tpu_custom_call.1} parent=5 // pred_check_branch
        %1817 = sbr.rel (%p1815) target = $region72
      $region71: #{tpu_custom_call.1} parent=5 // pred_region
        %s1818 = ssub.s32 %s22, 2
        // Predicated region
        $region73: #{tpu_custom_call.1} parent=71 // pred_check
          %p1819 = pneg %p245
        $region74: #{tpu_custom_call.1} parent=71 // pred_check_branch
          %1821 = sbr.rel (%p1819) target = $region76
        $region75: #{tpu_custom_call.1} parent=71 // pred_region
          %s1822 = sand.u32 %s230, 1
          %s1823 = scalar_lea.sflag [#allocation4], %s1822
          %s1824 = sand.u32 %s230, 1
          %s1825 = smul.addr %s1824, 32
          %s1826 = scalar_lea.vmem [#allocation7], %s1825
          %1827 = dma.done %s1823, 512
        $region76: #{tpu_custom_call.1} parent=71 // pred_fallthru
          _
      $region72: #{tpu_custom_call.1} parent=5 // pred_fallthru
        _
    $region6: #{tpu_custom_call.1} parent=1 // loop_footer
      %s26 = sadd.s32 1, %s22
    $region7: #{tpu_custom_call.1} parent=1 // loop_footer_branch
      %21 = sbr.rel target = $region3
    $region8: #{tpu_custom_call.1} parent=1 // loop_exit
      _
    %1828 = vsyncpa [#allocation3], 1
    %s1829 = scalar_lea.sflag [#allocation3], 1
    %1830 = vsyncpa %s1829, 1
    %1831 = vsyncpa [#allocation4], 1
    %s1832 = scalar_lea.sflag [#allocation4], 1
    %1833 = vsyncpa %s1832, 1
    %1834 = vsyncpa [#allocation5], 1
    %s1835 = scalar_lea.sflag [#allocation5], 1
    %1836 = vsyncpa %s1835, 1

</llo_original>
